<compile_context>
chip_gen: v6e
topology: v6e:2x2x1
jax: 0.10.0
libtpu: 0.0.40
codegen_flags: <defaults>
</compile_context>

<pallas_src>
import functools

import jax
import jax.numpy as jnp
from jax import lax
from jax.experimental import pallas as pl
from jax.experimental.pallas import tpu as pltpu


def _round_up(n, m):
    return (n + m - 1) // m * m


def _lstm_chunk_kernel(x_ref, wih_ref, whh_ref, b_ref, wout_ref, bout_ref,
                       y_ref, xproj_ref, hall_ref, h_ref, c_ref):
    """One chunk of T_CHUNK timesteps for the whole (padded) batch.

    Layouts (all 2-D, lane-dense, sublane-aligned; gate order [i, f, o, g]):
      x_ref      : (T_CHUNK*Bp, D_in)  bf16   time-major rows [t*Bp + b]
      wih_ref    : (D_in, 4*Hp)        bf16
      whh_ref    : (Hp,   4*Hp)        bf16
      b_ref      : (1,    4*Hp)        f32    b_ih + b_hh (reordered/padded)
      wout_ref   : (Hp,   Dop)         bf16
      bout_ref   : (1,    Dop)         f32
      y_ref      : (T_CHUNK*Bp, Dop)   f32
      xproj_ref  : (T_CHUNK*Bp, 4*Hp)  bf16   scratch (hoisted input proj)
      hall_ref   : (T_CHUNK*Bp, Hp)    bf16   scratch (hidden states of chunk)
      h_ref,c_ref: (Bp, Hp)            f32    persistent recurrent state
    """
    n_rows = xproj_ref.shape[0]
    b_pad, h_pad = h_ref.shape
    chunk = n_rows // b_pad

    # Recurrent state persists across grid steps; zero it on the first chunk.
    @pl.when(pl.program_id(0) == 0)
    def _():
        h_ref[...] = jnp.zeros_like(h_ref)
        c_ref[...] = jnp.zeros_like(c_ref)

    # Hoisted input projection: ONE MXU matmul for the whole chunk (+ bias).
    xproj_ref[...] = (
        jnp.dot(x_ref[...], wih_ref[...], preferred_element_type=jnp.float32)
        + b_ref[...]
    ).astype(xproj_ref.dtype)

    whh = whh_ref[...]   # hoisted out of the serial loop

    def step(t, carry):
        h, c = carry
        rows = pl.ds(pl.multiple_of(t * b_pad, b_pad), b_pad)
        gates = (xproj_ref[rows, :].astype(jnp.float32)
                 + jnp.dot(h.astype(jnp.bfloat16), whh,
                           preferred_element_type=jnp.float32))
        # Gate order pre-permuted to [i, f, o, g]: three sigmoids fused into
        # one contiguous EUP slab, tanh over the trailing Hp block.
        sig = jax.nn.sigmoid(gates[:, 0:3 * h_pad])
        i_g = sig[:, 0:h_pad]
        f_g = sig[:, h_pad:2 * h_pad]
        o_g = sig[:, 2 * h_pad:3 * h_pad]
        g_g = jnp.tanh(gates[:, 3 * h_pad:4 * h_pad])
        c_new = f_g * c + i_g * g_g            # f32 cell state / gate math
        h_new = o_g * jnp.tanh(c_new)
        hall_ref[rows, :] = h_new.astype(hall_ref.dtype)
        return h_new, c_new

    h_fin, c_fin = lax.fori_loop(0, chunk, step, (h_ref[...], c_ref[...]),
                                 unroll=min(4, chunk))
    h_ref[...] = h_fin
    c_ref[...] = c_fin

    # Hoisted output projection: one MXU matmul, one unmasked lane-dense store.
    y_ref[...] = (
        jnp.dot(hall_ref[...], wout_ref[...],
                preferred_element_type=jnp.float32)
        + bout_ref[...]
    ).astype(y_ref.dtype)


def _prep_gates(w, H, Hp):
    """PyTorch gate blocks [i, f, g, o] along axis 0 -> [i, f, o, g], each
    block zero-padded from H to Hp rows."""
    i, f, g, o = w[0:H], w[H:2 * H], w[2 * H:3 * H], w[3 * H:4 * H]

    def pad_block(blk):
        pw = [(0, Hp - H)] + [(0, 0)] * (blk.ndim - 1)
        return jnp.pad(blk, pw)

    return jnp.concatenate([pad_block(b) for b in (i, f, o, g)], axis=0)


@functools.partial(jax.jit, static_argnames=("t_chunk",))
def simple_lstm_forward(x, params, *, t_chunk=4):
    """x: (B, T, D_in) float32, batch_first like the PyTorch module."""
    w_ih, w_hh, b_ih, b_hh, w_out, b_out = (
        params["w_ih"], params["w_hh"], params["b_ih"], params["b_hh"],
        params["w_out"], params["b_out"])

    B, T, d_in = x.shape
    H = w_hh.shape[1]           # w_hh: (4H, H)
    d_out = w_out.shape[0]      # w_out: (D_out, H)

    b_pad = _round_up(B, 8)          # sublane alignment
    h_pad = _round_up(H, 128)        # lane alignment (gate slice boundaries)
    do_pad = _round_up(d_out, 128)   # lane-dense output store
    t_chunk = max(1, min(t_chunk, T))
    t_pad = _round_up(T, t_chunk)
    n_chunks = t_pad // t_chunk
    rows = t_chunk * b_pad

    # ---- Weight / bias prep (wrapper-side XLA, once per call) --------------
    wih_t = _prep_gates(w_ih, H, h_pad).T.astype(jnp.bfloat16)       # (d_in,4Hp)
    whh_p = _prep_gates(w_hh, H, h_pad)                              # (4Hp, H)
    whh_t = jnp.pad(whh_p, ((0, 0), (0, h_pad - H))).T.astype(jnp.bfloat16)
    bias = _prep_gates(b_ih + b_hh, H, h_pad).reshape(1, 4 * h_pad)
    bias = bias.astype(jnp.float32)
    wout_t = jnp.pad(w_out, ((0, do_pad - d_out), (0, h_pad - H)))
    wout_t = wout_t.T.astype(jnp.bfloat16)                           # (Hp, Dop)
    bout = jnp.pad(b_out, (0, do_pad - d_out)).reshape(1, do_pad)
    bout = bout.astype(jnp.float32)

    # ---- Input: time-major, padded, flattened to 2-D, bf16 MXU operand -----
    x_tm = jnp.transpose(x, (1, 0, 2))                               # (T,B,Din)
    x_tm = jnp.pad(x_tm, ((0, t_pad - T), (0, b_pad - B), (0, 0)))
    x_2d = x_tm.reshape(t_pad * b_pad, d_in).astype(jnp.bfloat16)

    # ---- VMEM budget: raise the scoped default to fit the resident set -----
    footprint = (
        2 * rows * d_in * 2                                   # x chunk (2-buf)
        + 2 * rows * do_pad * 4                               # y chunk (2-buf)
        + 2 * (d_in * 4 * h_pad + h_pad * 4 * h_pad + h_pad * do_pad) * 2
        + 2 * (4 * h_pad + do_pad) * 4                        # biases
        + rows * 4 * h_pad * 2                                # xproj scratch
        + rows * h_pad * 2                                    # hall scratch
        + 2 * b_pad * h_pad * 4                               # h, c state
    )
    vmem_limit = int(min(128 * 1024 * 1024,
                         max(32 * 1024 * 1024, 2 * footprint)))

    grid_spec = pltpu.PrefetchScalarGridSpec(
        num_scalar_prefetch=0,
        grid=(n_chunks,),
        in_specs=[
            pl.BlockSpec((rows, d_in), lambda i: (i, 0)),
            pl.BlockSpec((d_in, 4 * h_pad), lambda i: (0, 0)),
            pl.BlockSpec((h_pad, 4 * h_pad), lambda i: (0, 0)),
            pl.BlockSpec((1, 4 * h_pad), lambda i: (0, 0)),
            pl.BlockSpec((h_pad, do_pad), lambda i: (0, 0)),
            pl.BlockSpec((1, do_pad), lambda i: (0, 0)),
        ],
        out_specs=pl.BlockSpec((rows, do_pad), lambda i: (i, 0)),
        scratch_shapes=[
            pltpu.VMEM((rows, 4 * h_pad), jnp.bfloat16),   # hoisted x proj
            pltpu.VMEM((rows, h_pad), jnp.bfloat16),       # chunk hidden states
            pltpu.VMEM((b_pad, h_pad), jnp.float32),       # persistent h
            pltpu.VMEM((b_pad, h_pad), jnp.float32),       # persistent c
        ],
    )

    y_2d = pl.pallas_call(
        _lstm_chunk_kernel,
        out_shape=jax.ShapeDtypeStruct((t_pad * b_pad, do_pad), jnp.float32),
        grid_spec=grid_spec,
        compiler_params=pltpu.CompilerParams(
            dimension_semantics=("arbitrary",),   # serial recurrence over chunks
            vmem_limit_bytes=vmem_limit,
        ),
    )(x_2d, wih_t, whh_t, bias, wout_t, bout)

    y = y_2d.reshape(t_pad, b_pad, do_pad)[:T, :B, :d_out]
    return jnp.transpose(y, (1, 0, 2))                       # (B, T, D_out)


def _reference_forward(x, params, operand_dtype=jnp.float32):
    """Pure-JAX reference matching torch nn.LSTM(batch_first=True) + Linear.

    With operand_dtype=jnp.bfloat16 it mirrors the kernel's MXU-operand /
    staging rounding points (f32 accumulation and f32 gate math)."""
    w_ih, w_hh, b_ih, b_hh, w_out, b_out = (
        params["w_ih"], params["w_hh"], params["b_ih"], params["b_hh"],
        params["w_out"], params["b_out"])
    B, T, _ = x.shape
    H = w_hh.shape[1]
    f32 = jnp.float32
    cast = lambda a: a.astype(operand_dtype)

    def step(carry, x_t):
        h, c = carry
        xp = (jnp.dot(cast(x_t), cast(w_ih.T), preferred_element_type=f32)
              + b_ih + b_hh)
        xp = xp.astype(operand_dtype).astype(f32)     # xproj staged in operand_dtype
        gates = xp + jnp.dot(cast(h), cast(w_hh.T), preferred_element_type=f32)
        i = jax.nn.sigmoid(gates[:, 0:H])
        f = jax.nn.sigmoid(gates[:, H:2 * H])
        g = jnp.tanh(gates[:, 2 * H:3 * H])
        o = jax.nn.sigmoid(gates[:, 3 * H:4 * H])
        c = f * c + i * g
        h = o * jnp.tanh(c)
        return (h, c), h.astype(operand_dtype)        # hall staged in operand_dtype

    h0 = jnp.zeros((B, H), f32)
    c0 = jnp.zeros((B, H), f32)
    _, hs = lax.scan(step, (h0, c0), jnp.transpose(x, (1, 0, 2)))
    hs = jnp.transpose(hs, (1, 0, 2))                 # (B, T, H)
    return jnp.dot(cast(hs), cast(w_out.T), preferred_element_type=f32) + b_out


def init_params(key, input_size, hidden_size, output_size):
    ks = jax.random.split(key, 6)
    k = 1.0 / jnp.sqrt(hidden_size)
    u = lambda kk, shape, bound: jax.random.uniform(
        kk, shape, jnp.float32, -bound, bound)
    return {
        "w_ih": u(ks[0], (4 * hidden_size, input_size), k),
        "w_hh": u(ks[1], (4 * hidden_size, hidden_size), k),
        "b_ih": u(ks[2], (4 * hidden_size,), k),
        "b_hh": u(ks[3], (4 * hidden_size,), k),
        "w_out": u(ks[4], (output_size, hidden_size), k),
        "b_out": u(ks[5], (output_size,), k),
    }


if __name__ == "__main__":
    B, T, D_in, H, D_out = 2, 8, 16, 32, 8

    key = jax.random.PRNGKey(0)
    k_x, k_p = jax.random.split(key)
    x = jax.random.normal(k_x, (B, T, D_in), jnp.float32)
    params = init_params(k_p, D_in, H, D_out)

    y = simple_lstm_forward(x, params)
    y = jax.block_until_ready(y)
    assert y.shape == (B, T, D_out)

    # Tight check against a reference with matched bf16 MXU-operand rounding.
    y_match = _reference_forward(x, params, operand_dtype=jnp.bfloat16)
    assert jnp.allclose(y, y_match, atol=2e-3, rtol=2e-3), "matched-precision mismatch"

    # Looser check against the pure-f32 PyTorch-semantics reference
    # (difference is only bf16 rounding of MXU operands / staging buffers).
    y_f32 = _reference_forward(x, params)
    assert jnp.allclose(y, y_f32, atol=5e-2, rtol=5e-2), "f32 semantics mismatch"

    print("KERNEL_OK")
</pallas_src>

<mosaic_0001>
module attributes {stable_mosaic.version = 11 : i64} {
  func.func @_lstm_chunk_kernel(%arg0: i32, %arg1: memref<32x16xbf16, #tpu.memory_space<vmem>>, %arg2: memref<16x512xbf16, #tpu.memory_space<vmem>>, %arg3: memref<128x512xbf16, #tpu.memory_space<vmem>>, %arg4: memref<1x512xf32, #tpu.memory_space<vmem>>, %arg5: memref<128x128xbf16, #tpu.memory_space<vmem>>, %arg6: memref<1x128xf32, #tpu.memory_space<vmem>>, %arg7: memref<32x128xf32, #tpu.memory_space<vmem>>, %arg8: memref<32x512xbf16, #tpu.memory_space<vmem>>, %arg9: memref<32x128xbf16, #tpu.memory_space<vmem>>, %arg10: memref<8x128xf32, #tpu.memory_space<vmem>>, %arg11: memref<8x128xf32, #tpu.memory_space<vmem>>) attributes {dimension_semantics = [#tpu.dimension_semantics<arbitrary>], iteration_bounds = array<i64: 2>, scalar_prefetch = 0 : i64, scratch_operands = 4 : i64, tpu.core_type = #tpu.core_type<tc>, window_params = [{transform_indices = @transform_0, window_bounds = array<i64: 32, 16>}, {pipeline_mode = #tpu.pipeline_mode<synchronous>, transform_indices = @transform_1, window_bounds = array<i64: 16, 512>}, {pipeline_mode = #tpu.pipeline_mode<synchronous>, transform_indices = @transform_2, window_bounds = array<i64: 128, 512>}, {pipeline_mode = #tpu.pipeline_mode<synchronous>, transform_indices = @transform_3, window_bounds = array<i64: 1, 512>}, {pipeline_mode = #tpu.pipeline_mode<synchronous>, transform_indices = @transform_4, window_bounds = array<i64: 128, 128>}, {pipeline_mode = #tpu.pipeline_mode<synchronous>, transform_indices = @transform_5, window_bounds = array<i64: 1, 128>}, {transform_indices = @transform_6, window_bounds = array<i64: 32, 128>}]} {
    %c0_i32 = arith.constant 0 : i32
    %0 = arith.cmpi eq, %arg0, %c0_i32 : i32
    %1 = arith.extui %0 : i1 to i32
    %c0_i32_0 = arith.constant 0 : i32
    %2 = arith.cmpi ne, %1, %c0_i32_0 : i32
    scf.if %2 {
      %cst_47 = arith.constant 0.000000e+00 : f32
      %131 = vector.broadcast %cst_47 : f32 to vector<8x128xf32>
      %c0_48 = arith.constant 0 : index
      %c0_49 = arith.constant 0 : index
      %132 = vector.load %arg10[%c0_48, %c0_49] : memref<8x128xf32, #tpu.memory_space<vmem>>, vector<8x128xf32>
      tpu.vector_store %arg10[%c0_48, %c0_49], %131 {strides = array<i32>} : memref<8x128xf32, #tpu.memory_space<vmem>>, vector<8x128xf32>,
      %cst_50 = arith.constant 0.000000e+00 : f32
      %133 = vector.broadcast %cst_50 : f32 to vector<8x128xf32>
      %c0_51 = arith.constant 0 : index
      %c0_52 = arith.constant 0 : index
      %134 = vector.load %arg11[%c0_51, %c0_52] : memref<8x128xf32, #tpu.memory_space<vmem>>, vector<8x128xf32>
      tpu.vector_store %arg11[%c0_51, %c0_52], %133 {strides = array<i32>} : memref<8x128xf32, #tpu.memory_space<vmem>>, vector<8x128xf32>,
    } else {
    }
    %c0 = arith.constant 0 : index
    %c0_1 = arith.constant 0 : index
    %3 = vector.load %arg1[%c0, %c0_1] : memref<32x16xbf16, #tpu.memory_space<vmem>>, vector<32x16xbf16>
    %c0_2 = arith.constant 0 : index
    %c0_3 = arith.constant 0 : index
    %4 = vector.load %arg2[%c0_2, %c0_3] : memref<16x512xbf16, #tpu.memory_space<vmem>>, vector<16x512xbf16>
    %cst = arith.constant dense<0.000000e+00> : vector<32x512xf32>
    %5 = tpu.matmul %3, %4, %cst {dimension_numbers = #tpu.dot_dimension_numbers<[1], [0], [0], [1], [0, 0, 1, 1], [], []>} : vector<32x16xbf16>, vector<16x512xbf16>, vector<32x512xf32> -> vector<32x512xf32>
    %c0_4 = arith.constant 0 : index
    %c0_5 = arith.constant 0 : index
    %6 = vector.load %arg4[%c0_4, %c0_5] : memref<1x512xf32, #tpu.memory_space<vmem>>, vector<1x512xf32>
    %7 = vector.broadcast %6 : vector<1x512xf32> to vector<32x512xf32>
    %8 = arith.addf %5, %7 : vector<32x512xf32>
    %9 = arith.truncf %8 : vector<32x512xf32> to vector<32x512xbf16>
    %c0_6 = arith.constant 0 : index
    %c0_7 = arith.constant 0 : index
    %10 = vector.load %arg8[%c0_6, %c0_7] : memref<32x512xbf16, #tpu.memory_space<vmem>>, vector<32x512xbf16>
    tpu.vector_store %arg8[%c0_6, %c0_7], %9 {strides = array<i32>} : memref<32x512xbf16, #tpu.memory_space<vmem>>, vector<32x512xbf16>,
    %c0_8 = arith.constant 0 : index
    %c0_9 = arith.constant 0 : index
    %11 = vector.load %arg3[%c0_8, %c0_9] : memref<128x512xbf16, #tpu.memory_space<vmem>>, vector<128x512xbf16>
    %c0_10 = arith.constant 0 : index
    %c0_11 = arith.constant 0 : index
    %12 = vector.load %arg10[%c0_10, %c0_11] : memref<8x128xf32, #tpu.memory_space<vmem>>, vector<8x128xf32>
    %c0_12 = arith.constant 0 : index
    %c0_13 = arith.constant 0 : index
    %13 = vector.load %arg11[%c0_12, %c0_13] : memref<8x128xf32, #tpu.memory_space<vmem>>, vector<8x128xf32>
    %c0_i32_14 = arith.constant 0 : i32
    %c8_i32 = arith.constant 8 : i32
    %14 = arith.muli %c0_i32_14, %c8_i32 : i32
    %15 = tpu.assume_multiple %14, 8 : i32
    %16 = arith.index_cast %15 : i32 to index
    %c0_15 = arith.constant 0 : index
    %17 = vector.load %arg8[%16, %c0_15] : memref<32x512xbf16, #tpu.memory_space<vmem>>, vector<8x512xbf16>
    %18 = arith.extf %17 : vector<8x512xbf16> to vector<8x512xf32>
    %19 = arith.truncf %12 : vector<8x128xf32> to vector<8x128xbf16>
    %cst_16 = arith.constant dense<0.000000e+00> : vector<8x512xf32>
    %20 = tpu.matmul %19, %11, %cst_16 {dimension_numbers = #tpu.dot_dimension_numbers<[1], [0], [0], [1], [0, 0, 1, 1], [], []>} : vector<8x128xbf16>, vector<128x512xbf16>, vector<8x512xf32> -> vector<8x512xf32>
    %21 = arith.addf %18, %20 : vector<8x512xf32>
    %22 = vector.extract_strided_slice %21 {offsets = [0, 0], sizes = [8, 384], strides = [1, 1]} : vector<8x512xf32> to vector<8x384xf32>
    %23 = arith.negf %22 : vector<8x384xf32>
    %24 = math.exp %23 : vector<8x384xf32>
    %cst_17 = arith.constant 1.000000e+00 : f32
    %25 = vector.broadcast %cst_17 : f32 to vector<8x384xf32>
    %26 = arith.addf %25, %24 : vector<8x384xf32>
    %27 = arith.divf %25, %26 : vector<8x384xf32>
    %28 = vector.extract_strided_slice %27 {offsets = [0, 0], sizes = [8, 128], strides = [1, 1]} : vector<8x384xf32> to vector<8x128xf32>
    %29 = vector.extract_strided_slice %27 {offsets = [0, 128], sizes = [8, 128], strides = [1, 1]} : vector<8x384xf32> to vector<8x128xf32>
    %30 = vector.extract_strided_slice %27 {offsets = [0, 256], sizes = [8, 128], strides = [1, 1]} : vector<8x384xf32> to vector<8x128xf32>
    %31 = vector.extract_strided_slice %21 {offsets = [0, 384], sizes = [8, 128], strides = [1, 1]} : vector<8x512xf32> to vector<8x128xf32>
    %32 = math.tanh %31 : vector<8x128xf32>
    %33 = arith.mulf %29, %13 : vector<8x128xf32>
    %34 = arith.mulf %28, %32 : vector<8x128xf32>
    %35 = arith.addf %33, %34 : vector<8x128xf32>
    %36 = math.tanh %35 : vector<8x128xf32>
    %37 = arith.mulf %30, %36 : vector<8x128xf32>
    %38 = arith.truncf %37 : vector<8x128xf32> to vector<8x128xbf16>
    %39 = arith.index_cast %15 : i32 to index
    %c0_18 = arith.constant 0 : index
    %40 = vector.load %arg9[%39, %c0_18] : memref<32x128xbf16, #tpu.memory_space<vmem>>, vector<8x128xbf16>
    tpu.vector_store %arg9[%39, %c0_18], %38 {strides = array<i32>} : memref<32x128xbf16, #tpu.memory_space<vmem>>, vector<8x128xbf16>,
    %c1_i32 = arith.constant 1 : i32
    %c8_i32_19 = arith.constant 8 : i32
    %41 = arith.muli %c1_i32, %c8_i32_19 : i32
    %42 = tpu.assume_multiple %41, 8 : i32
    %43 = arith.index_cast %42 : i32 to index
    %c0_20 = arith.constant 0 : index
    %44 = vector.load %arg8[%43, %c0_20] : memref<32x512xbf16, #tpu.memory_space<vmem>>, vector<8x512xbf16>
    %45 = arith.extf %44 : vector<8x512xbf16> to vector<8x512xf32>
    %46 = arith.truncf %37 : vector<8x128xf32> to vector<8x128xbf16>
    %cst_21 = arith.constant dense<0.000000e+00> : vector<8x512xf32>
    %47 = tpu.matmul %46, %11, %cst_21 {dimension_numbers = #tpu.dot_dimension_numbers<[1], [0], [0], [1], [0, 0, 1, 1], [], []>} : vector<8x128xbf16>, vector<128x512xbf16>, vector<8x512xf32> -> vector<8x512xf32>
    %48 = arith.addf %45, %47 : vector<8x512xf32>
    %49 = vector.extract_strided_slice %48 {offsets = [0, 0], sizes = [8, 384], strides = [1, 1]} : vector<8x512xf32> to vector<8x384xf32>
    %50 = arith.negf %49 : vector<8x384xf32>
    %51 = math.exp %50 : vector<8x384xf32>
    %cst_22 = arith.constant 1.000000e+00 : f32
    %52 = vector.broadcast %cst_22 : f32 to vector<8x384xf32>
    %53 = arith.addf %52, %51 : vector<8x384xf32>
    %54 = arith.divf %52, %53 : vector<8x384xf32>
    %55 = vector.extract_strided_slice %54 {offsets = [0, 0], sizes = [8, 128], strides = [1, 1]} : vector<8x384xf32> to vector<8x128xf32>
    %56 = vector.extract_strided_slice %54 {offsets = [0, 128], sizes = [8, 128], strides = [1, 1]} : vector<8x384xf32> to vector<8x128xf32>
    %57 = vector.extract_strided_slice %54 {offsets = [0, 256], sizes = [8, 128], strides = [1, 1]} : vector<8x384xf32> to vector<8x128xf32>
    %58 = vector.extract_strided_slice %48 {offsets = [0, 384], sizes = [8, 128], strides = [1, 1]} : vector<8x512xf32> to vector<8x128xf32>
    %59 = math.tanh %58 : vector<8x128xf32>
    %60 = arith.mulf %56, %35 : vector<8x128xf32>
    %61 = arith.mulf %55, %59 : vector<8x128xf32>
    %62 = arith.addf %60, %61 : vector<8x128xf32>
    %63 = math.tanh %62 : vector<8x128xf32>
    %64 = arith.mulf %57, %63 : vector<8x128xf32>
    %65 = arith.truncf %64 : vector<8x128xf32> to vector<8x128xbf16>
    %66 = arith.index_cast %42 : i32 to index
    %c0_23 = arith.constant 0 : index
    %67 = vector.load %arg9[%66, %c0_23] : memref<32x128xbf16, #tpu.memory_space<vmem>>, vector<8x128xbf16>
    tpu.vector_store %arg9[%66, %c0_23], %65 {strides = array<i32>} : memref<32x128xbf16, #tpu.memory_space<vmem>>, vector<8x128xbf16>,
    %c2_i32 = arith.constant 2 : i32
    %c8_i32_24 = arith.constant 8 : i32
    %68 = arith.muli %c2_i32, %c8_i32_24 : i32
    %69 = tpu.assume_multiple %68, 8 : i32
    %70 = arith.index_cast %69 : i32 to index
    %c0_25 = arith.constant 0 : index
    %71 = vector.load %arg8[%70, %c0_25] : memref<32x512xbf16, #tpu.memory_space<vmem>>, vector<8x512xbf16>
    %72 = arith.extf %71 : vector<8x512xbf16> to vector<8x512xf32>
    %73 = arith.truncf %64 : vector<8x128xf32> to vector<8x128xbf16>
    %cst_26 = arith.constant dense<0.000000e+00> : vector<8x512xf32>
    %74 = tpu.matmul %73, %11, %cst_26 {dimension_numbers = #tpu.dot_dimension_numbers<[1], [0], [0], [1], [0, 0, 1, 1], [], []>} : vector<8x128xbf16>, vector<128x512xbf16>, vector<8x512xf32> -> vector<8x512xf32>
    %75 = arith.addf %72, %74 : vector<8x512xf32>
    %76 = vector.extract_strided_slice %75 {offsets = [0, 0], sizes = [8, 384], strides = [1, 1]} : vector<8x512xf32> to vector<8x384xf32>
    %77 = arith.negf %76 : vector<8x384xf32>
    %78 = math.exp %77 : vector<8x384xf32>
    %cst_27 = arith.constant 1.000000e+00 : f32
    %79 = vector.broadcast %cst_27 : f32 to vector<8x384xf32>
    %80 = arith.addf %79, %78 : vector<8x384xf32>
    %81 = arith.divf %79, %80 : vector<8x384xf32>
    %82 = vector.extract_strided_slice %81 {offsets = [0, 0], sizes = [8, 128], strides = [1, 1]} : vector<8x384xf32> to vector<8x128xf32>
    %83 = vector.extract_strided_slice %81 {offsets = [0, 128], sizes = [8, 128], strides = [1, 1]} : vector<8x384xf32> to vector<8x128xf32>
    %84 = vector.extract_strided_slice %81 {offsets = [0, 256], sizes = [8, 128], strides = [1, 1]} : vector<8x384xf32> to vector<8x128xf32>
    %85 = vector.extract_strided_slice %75 {offsets = [0, 384], sizes = [8, 128], strides = [1, 1]} : vector<8x512xf32> to vector<8x128xf32>
    %86 = math.tanh %85 : vector<8x128xf32>
    %87 = arith.mulf %83, %62 : vector<8x128xf32>
    %88 = arith.mulf %82, %86 : vector<8x128xf32>
    %89 = arith.addf %87, %88 : vector<8x128xf32>
    %90 = math.tanh %89 : vector<8x128xf32>
    %91 = arith.mulf %84, %90 : vector<8x128xf32>
    %92 = arith.truncf %91 : vector<8x128xf32> to vector<8x128xbf16>
    %93 = arith.index_cast %69 : i32 to index
    %c0_28 = arith.constant 0 : index
    %94 = vector.load %arg9[%93, %c0_28] : memref<32x128xbf16, #tpu.memory_space<vmem>>, vector<8x128xbf16>
    tpu.vector_store %arg9[%93, %c0_28], %92 {strides = array<i32>} : memref<32x128xbf16, #tpu.memory_space<vmem>>, vector<8x128xbf16>,
    %c3_i32 = arith.constant 3 : i32
    %c8_i32_29 = arith.constant 8 : i32
    %95 = arith.muli %c3_i32, %c8_i32_29 : i32
    %96 = tpu.assume_multiple %95, 8 : i32
    %97 = arith.index_cast %96 : i32 to index
    %c0_30 = arith.constant 0 : index
    %98 = vector.load %arg8[%97, %c0_30] : memref<32x512xbf16, #tpu.memory_space<vmem>>, vector<8x512xbf16>
    %99 = arith.extf %98 : vector<8x512xbf16> to vector<8x512xf32>
    %100 = arith.truncf %91 : vector<8x128xf32> to vector<8x128xbf16>
    %cst_31 = arith.constant dense<0.000000e+00> : vector<8x512xf32>
    %101 = tpu.matmul %100, %11, %cst_31 {dimension_numbers = #tpu.dot_dimension_numbers<[1], [0], [0], [1], [0, 0, 1, 1], [], []>} : vector<8x128xbf16>, vector<128x512xbf16>, vector<8x512xf32> -> vector<8x512xf32>
    %102 = arith.addf %99, %101 : vector<8x512xf32>
    %103 = vector.extract_strided_slice %102 {offsets = [0, 0], sizes = [8, 384], strides = [1, 1]} : vector<8x512xf32> to vector<8x384xf32>
    %104 = arith.negf %103 : vector<8x384xf32>
    %105 = math.exp %104 : vector<8x384xf32>
    %cst_32 = arith.constant 1.000000e+00 : f32
    %106 = vector.broadcast %cst_32 : f32 to vector<8x384xf32>
    %107 = arith.addf %106, %105 : vector<8x384xf32>
    %108 = arith.divf %106, %107 : vector<8x384xf32>
    %109 = vector.extract_strided_slice %108 {offsets = [0, 0], sizes = [8, 128], strides = [1, 1]} : vector<8x384xf32> to vector<8x128xf32>
    %110 = vector.extract_strided_slice %108 {offsets = [0, 128], sizes = [8, 128], strides = [1, 1]} : vector<8x384xf32> to vector<8x128xf32>
    %111 = vector.extract_strided_slice %108 {offsets = [0, 256], sizes = [8, 128], strides = [1, 1]} : vector<8x384xf32> to vector<8x128xf32>
    %112 = vector.extract_strided_slice %102 {offsets = [0, 384], sizes = [8, 128], strides = [1, 1]} : vector<8x512xf32> to vector<8x128xf32>
    %113 = math.tanh %112 : vector<8x128xf32>
    %114 = arith.mulf %110, %89 : vector<8x128xf32>
    %115 = arith.mulf %109, %113 : vector<8x128xf32>
    %116 = arith.addf %114, %115 : vector<8x128xf32>
    %117 = math.tanh %116 : vector<8x128xf32>
    %118 = arith.mulf %111, %117 : vector<8x128xf32>
    %119 = arith.truncf %118 : vector<8x128xf32> to vector<8x128xbf16>
    %120 = arith.index_cast %96 : i32 to index
    %c0_33 = arith.constant 0 : index
    %121 = vector.load %arg9[%120, %c0_33] : memref<32x128xbf16, #tpu.memory_space<vmem>>, vector<8x128xbf16>
    tpu.vector_store %arg9[%120, %c0_33], %119 {strides = array<i32>} : memref<32x128xbf16, #tpu.memory_space<vmem>>, vector<8x128xbf16>,
    %c4_i32 = arith.constant 4 : i32
    %c0_34 = arith.constant 0 : index
    %c0_35 = arith.constant 0 : index
    %122 = vector.load %arg10[%c0_34, %c0_35] : memref<8x128xf32, #tpu.memory_space<vmem>>, vector<8x128xf32>
    tpu.vector_store %arg10[%c0_34, %c0_35], %118 {strides = array<i32>} : memref<8x128xf32, #tpu.memory_space<vmem>>, vector<8x128xf32>,
    %c0_36 = arith.constant 0 : index
    %c0_37 = arith.constant 0 : index
    %123 = vector.load %arg11[%c0_36, %c0_37] : memref<8x128xf32, #tpu.memory_space<vmem>>, vector<8x128xf32>
    tpu.vector_store %arg11[%c0_36, %c0_37], %116 {strides = array<i32>} : memref<8x128xf32, #tpu.memory_space<vmem>>, vector<8x128xf32>,
    %c0_38 = arith.constant 0 : index
    %c0_39 = arith.constant 0 : index
    %124 = vector.load %arg9[%c0_38, %c0_39] : memref<32x128xbf16, #tpu.memory_space<vmem>>, vector<32x128xbf16>
    %c0_40 = arith.constant 0 : index
    %c0_41 = arith.constant 0 : index
    %125 = vector.load %arg5[%c0_40, %c0_41] : memref<128x128xbf16, #tpu.memory_space<vmem>>, vector<128x128xbf16>
    %cst_42 = arith.constant dense<0.000000e+00> : vector<32x128xf32>
    %126 = tpu.matmul %124, %125, %cst_42 {dimension_numbers = #tpu.dot_dimension_numbers<[1], [0], [0], [1], [0, 0, 1, 1], [], []>} : vector<32x128xbf16>, vector<128x128xbf16>, vector<32x128xf32> -> vector<32x128xf32>
    %c0_43 = arith.constant 0 : index
    %c0_44 = arith.constant 0 : index
    %127 = vector.load %arg6[%c0_43, %c0_44] : memref<1x128xf32, #tpu.memory_space<vmem>>, vector<1x128xf32>
    %128 = vector.broadcast %127 : vector<1x128xf32> to vector<32x128xf32>
    %129 = arith.addf %126, %128 : vector<32x128xf32>
    %c0_45 = arith.constant 0 : index
    %c0_46 = arith.constant 0 : index
    %130 = vector.load %arg7[%c0_45, %c0_46] : memref<32x128xf32, #tpu.memory_space<vmem>>, vector<32x128xf32>
    tpu.vector_store %arg7[%c0_45, %c0_46], %129 {strides = array<i32>} : memref<32x128xf32, #tpu.memory_space<vmem>>, vector<32x128xf32>,
    return
  }
  func.func @transform_0(%arg0: i32) -> (i32, i32) {
    %c0_i32 = arith.constant 0 : i32
    %c0_i32_0 = arith.constant 0 : i32
    return %arg0, %c0_i32 : i32, i32
  }
  func.func @transform_1(%arg0: i32) -> (i32, i32) {
    %c0_i32 = arith.constant 0 : i32
    %c0_i32_0 = arith.constant 0 : i32
    %c0_i32_1 = arith.constant 0 : i32
    return %c0_i32, %c0_i32_0 : i32, i32
  }
  func.func @transform_2(%arg0: i32) -> (i32, i32) {
    %c0_i32 = arith.constant 0 : i32
    %c0_i32_0 = arith.constant 0 : i32
    %c0_i32_1 = arith.constant 0 : i32
    return %c0_i32, %c0_i32_0 : i32, i32
  }
  func.func @transform_3(%arg0: i32) -> (i32, i32) {
    %c0_i32 = arith.constant 0 : i32
    %c0_i32_0 = arith.constant 0 : i32
    %c0_i32_1 = arith.constant 0 : i32
    return %c0_i32, %c0_i32_0 : i32, i32
  }
  func.func @transform_4(%arg0: i32) -> (i32, i32) {
    %c0_i32 = arith.constant 0 : i32
    %c0_i32_0 = arith.constant 0 : i32
    %c0_i32_1 = arith.constant 0 : i32
    return %c0_i32, %c0_i32_0 : i32, i32
  }
  func.func @transform_5(%arg0: i32) -> (i32, i32) {
    %c0_i32 = arith.constant 0 : i32
    %c0_i32_0 = arith.constant 0 : i32
    %c0_i32_1 = arith.constant 0 : i32
    return %c0_i32, %c0_i32_0 : i32, i32
  }
  func.func @transform_6(%arg0: i32) -> (i32, i32) {
    %c0_i32 = arith.constant 0 : i32
    %c0_i32_0 = arith.constant 0 : i32
    return %arg0, %c0_i32 : i32, i32
  }
}

</mosaic_0001>

<llo_original>
// kernel: simple_lstm_forward.1
$region0: #{simple_lstm_forward.1}
  #allocation0 [shape = 'u32[]', space=smem, size = 0x4, offset = 0x4, fixed_abs, tag = 'smem constant byte address 0x4 - core index']
  #allocation1 [shape = 'u32[144,128]{1,0:T(1,128)}', space=vmem, size = 0x12000, scoped, tag = 'internal scratch']
  #allocation2 [shape = 'bf16[32,512]{1,0:T(8,128)(2,1)}', space=vmem, size = 0x8000, scoped, tag = 'scratch operand']
  #allocation3 [shape = 'bf16[32,128]{1,0:T(8,128)(2,1)}', space=vmem, size = 0x2000, scoped, tag = 'scratch operand']
  #allocation4 [shape = 'f32[8,128]{1,0:T(8,128)}', space=vmem, size = 0x1000, scoped, tag = 'scratch operand']
  #allocation5 [shape = 'f32[8,128]{1,0:T(8,128)}', space=vmem, size = 0x1000, scoped, tag = 'scratch operand']
  %s0 = inlined_call_operand.vmem [shape: bf16[64,16], index: 0, kind: input, shape index: {}]
  %s1 = inlined_call_operand.vmem [shape: bf16[16,512], index: 1, kind: input, shape index: {}]
  %s2 = inlined_call_operand.vmem [shape: bf16[128,512], index: 2, kind: input, shape index: {}]
  %s3 = inlined_call_operand.vmem [shape: f32[1,512], index: 3, kind: input, shape index: {}]
  %s4 = inlined_call_operand.vmem [shape: bf16[128,128], index: 4, kind: input, shape index: {}]
  %s5 = inlined_call_operand.vmem [shape: f32[1,128], index: 5, kind: input, shape index: {}]
  %s6 = inlined_call_operand.vmem [shape: f32[64,128], index: 6, kind: output, shape index: {}]
  %s7 = sld [smem:[#allocation0]]
  $region61: #{simple_lstm_forward.1} parent=0
    _
  %s9 = ssub.s32 1, %s7
  %s10 = scalar_select 0, %s9, %s7
  loop: start=0, step=1, limit=4
  $region2: #{simple_lstm_forward.1} parent=0 // loop_pre_header
    _
  $region3: #{simple_lstm_forward.1} parent=0 // loop_header
    %s12 = sphi 0, %s16
    %p13 = scmp.ge.s32.totalorder %s12, 4
    %s22 = sphi 0, %s24
    %s25 = sphi 0, %s22
    %s26 = sphi 0, %s25
    %s42 = sphi 0, %s26
    %s46 = sphi 0, %s46
    %s48 = sphi 0, %s46
    %s49 = sphi 0, %s48
    %s63 = sphi 0, %s49
    %s67 = sphi 0, %s67
    %s69 = sphi 0, %s67
    %s70 = sphi 0, %s69
    %s84 = sphi 0, %s70
    %s88 = sphi 0, %s88
    %s90 = sphi 0, %s88
    %s91 = sphi 0, %s90
    %s105 = sphi 0, %s91
    %s109 = sphi 0, %s109
    %s111 = sphi 0, %s109
    %s112 = sphi 0, %s111
    %s126 = sphi 0, %s112
    %s130 = sphi 0, %s130
    %s132 = sphi 0, %s130
    %s133 = sphi 0, %s132
    %s147 = sphi 0, %s133
    %s153 = sphi 0, %s155
    %s156 = sphi 0, %s153
    %s157 = sphi 0, %s156
    %s173 = sphi 0, %s157
  $region4: #{simple_lstm_forward.1} parent=0 // loop_header_branch
    %15 = sbr.rel (%p13) target = $region8
  $region5: #{simple_lstm_forward.1} parent=0 // loop_body
    %s17 = ssub.s32 %s12, 1
    %s18 = ssub.s32 %s12, 2
    %s19 = sadd.s32 %s12, 1
    %s20 = ssub.s32 %s12, %s19
    %p21 = scmp.eq.s32.totalorder %s20, 0
    %s23 = sadd.s32 %s22, 1
    %s24 = scalar_select %p21, %s22, %s23
    %p27 = pneg %p21
    %p28 = scmp.eq.s32.totalorder %s12, 1
    %p29 = por %p27, %p28
    %p30 = scmp.ne.s32.totalorder %s22, %s25
    %p31 = scmp.eq.s32.totalorder %s12, 0
    %p32 = por %p30, %p31
    %p33 = scmp.ne.s32.totalorder %s22, %s25
    %p34 = scmp.eq.s32.totalorder %s17, 1
    %p35 = por %p33, %p34
    %p36 = scmp.ne.s32.totalorder %s25, %s26
    %p37 = scmp.eq.s32.totalorder %s17, 0
    %p38 = por %p36, %p37
    %p39 = scmp.ne.s32.totalorder %s25, %s26
    %p40 = scmp.eq.s32.totalorder %s18, 1
    %p41 = por %p39, %p40
    %p43 = scmp.ne.s32.totalorder %s26, %s42
    %p44 = scmp.eq.s32.totalorder %s18, 0
    %p45 = por %p43, %p44
    %s47 = sadd.s32 %s46, 1
    %p50 = scmp.eq.s32.totalorder %s12, 1
    %p51 = scmp.ne.s32.totalorder %s46, %s48
    %p52 = scmp.eq.s32.totalorder %s12, 0
    %p53 = por %p51, %p52
    %p54 = scmp.ne.s32.totalorder %s46, %s48
    %p55 = scmp.eq.s32.totalorder %s17, 1
    %p56 = por %p54, %p55
    %p57 = scmp.ne.s32.totalorder %s48, %s49
    %p58 = scmp.eq.s32.totalorder %s17, 0
    %p59 = por %p57, %p58
    %p60 = scmp.ne.s32.totalorder %s48, %s49
    %p61 = scmp.eq.s32.totalorder %s18, 1
    %p62 = por %p60, %p61
    %p64 = scmp.ne.s32.totalorder %s49, %s63
    %p65 = scmp.eq.s32.totalorder %s18, 0
    %p66 = por %p64, %p65
    %s68 = sadd.s32 %s67, 1
    %p71 = scmp.eq.s32.totalorder %s12, 1
    %p72 = scmp.ne.s32.totalorder %s67, %s69
    %p73 = scmp.eq.s32.totalorder %s12, 0
    %p74 = por %p72, %p73
    %p75 = scmp.ne.s32.totalorder %s67, %s69
    %p76 = scmp.eq.s32.totalorder %s17, 1
    %p77 = por %p75, %p76
    %p78 = scmp.ne.s32.totalorder %s69, %s70
    %p79 = scmp.eq.s32.totalorder %s17, 0
    %p80 = por %p78, %p79
    %p81 = scmp.ne.s32.totalorder %s69, %s70
    %p82 = scmp.eq.s32.totalorder %s18, 1
    %p83 = por %p81, %p82
    %p85 = scmp.ne.s32.totalorder %s70, %s84
    %p86 = scmp.eq.s32.totalorder %s18, 0
    %p87 = por %p85, %p86
    %s89 = sadd.s32 %s88, 1
    %p92 = scmp.eq.s32.totalorder %s12, 1
    %p93 = scmp.ne.s32.totalorder %s88, %s90
    %p94 = scmp.eq.s32.totalorder %s12, 0
    %p95 = por %p93, %p94
    %p96 = scmp.ne.s32.totalorder %s88, %s90
    %p97 = scmp.eq.s32.totalorder %s17, 1
    %p98 = por %p96, %p97
    %p99 = scmp.ne.s32.totalorder %s90, %s91
    %p100 = scmp.eq.s32.totalorder %s17, 0
    %p101 = por %p99, %p100
    %p102 = scmp.ne.s32.totalorder %s90, %s91
    %p103 = scmp.eq.s32.totalorder %s18, 1
    %p104 = por %p102, %p103
    %p106 = scmp.ne.s32.totalorder %s91, %s105
    %p107 = scmp.eq.s32.totalorder %s18, 0
    %p108 = por %p106, %p107
    %s110 = sadd.s32 %s109, 1
    %p113 = scmp.eq.s32.totalorder %s12, 1
    %p114 = scmp.ne.s32.totalorder %s109, %s111
    %p115 = scmp.eq.s32.totalorder %s12, 0
    %p116 = por %p114, %p115
    %p117 = scmp.ne.s32.totalorder %s109, %s111
    %p118 = scmp.eq.s32.totalorder %s17, 1
    %p119 = por %p117, %p118
    %p120 = scmp.ne.s32.totalorder %s111, %s112
    %p121 = scmp.eq.s32.totalorder %s17, 0
    %p122 = por %p120, %p121
    %p123 = scmp.ne.s32.totalorder %s111, %s112
    %p124 = scmp.eq.s32.totalorder %s18, 1
    %p125 = por %p123, %p124
    %p127 = scmp.ne.s32.totalorder %s112, %s126
    %p128 = scmp.eq.s32.totalorder %s18, 0
    %p129 = por %p127, %p128
    %s131 = sadd.s32 %s130, 1
    %p134 = scmp.eq.s32.totalorder %s12, 1
    %p135 = scmp.ne.s32.totalorder %s130, %s132
    %p136 = scmp.eq.s32.totalorder %s12, 0
    %p137 = por %p135, %p136
    %p138 = scmp.ne.s32.totalorder %s130, %s132
    %p139 = scmp.eq.s32.totalorder %s17, 1
    %p140 = por %p138, %p139
    %p141 = scmp.ne.s32.totalorder %s132, %s133
    %p142 = scmp.eq.s32.totalorder %s17, 0
    %p143 = por %p141, %p142
    %p144 = scmp.ne.s32.totalorder %s132, %s133
    %p145 = scmp.eq.s32.totalorder %s18, 1
    %p146 = por %p144, %p145
    %p148 = scmp.ne.s32.totalorder %s133, %s147
    %p149 = scmp.eq.s32.totalorder %s18, 0
    %p150 = por %p148, %p149
    %s151 = ssub.s32 %s12, %s19
    %p152 = scmp.eq.s32.totalorder %s151, 0
    %s154 = sadd.s32 %s153, 1
    %s155 = scalar_select %p152, %s153, %s154
    %p158 = pneg %p152
    %p159 = scmp.eq.s32.totalorder %s12, 1
    %p160 = por %p158, %p159
    %p161 = scmp.ne.s32.totalorder %s153, %s156
    %p162 = scmp.eq.s32.totalorder %s12, 0
    %p163 = por %p161, %p162
    %p164 = scmp.ne.s32.totalorder %s153, %s156
    %p165 = scmp.eq.s32.totalorder %s17, 1
    %p166 = por %p164, %p165
    %p167 = scmp.ne.s32.totalorder %s156, %s157
    %p168 = scmp.eq.s32.totalorder %s17, 0
    %p169 = por %p167, %p168
    %p170 = scmp.ne.s32.totalorder %s156, %s157
    %p171 = scmp.eq.s32.totalorder %s18, 1
    %p172 = por %p170, %p171
    %p174 = scmp.ne.s32.totalorder %s157, %s173
    %p175 = scmp.eq.s32.totalorder %s18, 0
    %p176 = por %p174, %p175
    %p177 = scmp.le.s32.totalorder 1, %s12
    %p178 = scmp.lt.s32.totalorder %s12, 3
    %p179 = pnand %p177, %p178
    %p180 = pneg %p179
    // Predicated region
    $region9: #{simple_lstm_forward.1} parent=5 // pred_check
      _
    $region10: #{simple_lstm_forward.1} parent=5 // pred_check_branch
      %182 = sbr.rel (%p179) target = $region12
    $region11: #{simple_lstm_forward.1} parent=5 // pred_region
      %s183 = ssub.s32 %s12, 1
      // Predicated region
      $region13: #{simple_lstm_forward.1} parent=11 // pred_check
        %p184 = pneg %p59
      $region14: #{simple_lstm_forward.1} parent=11 // pred_check_branch
        %186 = sbr.rel (%p184) target = $region16
      $region15: #{simple_lstm_forward.1} parent=11 // pred_region
        _
      $region16: #{simple_lstm_forward.1} parent=11 // pred_fallthru
        _
      // Predicated region
      $region17: #{simple_lstm_forward.1} parent=11 // pred_check
        %p187 = pneg %p80
      $region18: #{simple_lstm_forward.1} parent=11 // pred_check_branch
        %189 = sbr.rel (%p187) target = $region20
      $region19: #{simple_lstm_forward.1} parent=11 // pred_region
        _
      $region20: #{simple_lstm_forward.1} parent=11 // pred_fallthru
        _
      // Predicated region
      $region21: #{simple_lstm_forward.1} parent=11 // pred_check
        %p190 = pneg %p101
      $region22: #{simple_lstm_forward.1} parent=11 // pred_check_branch
        %192 = sbr.rel (%p190) target = $region24
      $region23: #{simple_lstm_forward.1} parent=11 // pred_region
        _
      $region24: #{simple_lstm_forward.1} parent=11 // pred_fallthru
        _
      // Predicated region
      $region25: #{simple_lstm_forward.1} parent=11 // pred_check
        %p193 = pneg %p122
      $region26: #{simple_lstm_forward.1} parent=11 // pred_check_branch
        %195 = sbr.rel (%p193) target = $region28
      $region27: #{simple_lstm_forward.1} parent=11 // pred_region
        _
      $region28: #{simple_lstm_forward.1} parent=11 // pred_fallthru
        _
      // Predicated region
      $region29: #{simple_lstm_forward.1} parent=11 // pred_check
        %p196 = pneg %p143
      $region30: #{simple_lstm_forward.1} parent=11 // pred_check_branch
        %198 = sbr.rel (%p196) target = $region32
      $region31: #{simple_lstm_forward.1} parent=11 // pred_region
        _
      $region32: #{simple_lstm_forward.1} parent=11 // pred_fallthru
        _
    $region12: #{simple_lstm_forward.1} parent=5 // pred_fallthru
      _
    %p199 = scmp.lt.s32.totalorder %s12, 2
    // Predicated region
    $region33: #{simple_lstm_forward.1} parent=5 // pred_check
      %p200 = pneg %p199
    $region34: #{simple_lstm_forward.1} parent=5 // pred_check_branch
      %202 = sbr.rel (%p200) target = $region36
    $region35: #{simple_lstm_forward.1} parent=5 // pred_region
      // Predicated region
      $region37: #{simple_lstm_forward.1} parent=35 // pred_check
        %p203 = pneg %p32
      $region38: #{simple_lstm_forward.1} parent=35 // pred_check_branch
        %205 = sbr.rel (%p203) target = $region40
      $region39: #{simple_lstm_forward.1} parent=35 // pred_region
        %s206 = smul.u32 4, %s12
        %p207 = scmp.lt.s32.totalorder %s206, 7
        %s208 = scalar_select %p207, %s206, 7
        %s209 = smul.addr %s208, 4
        %s210 = scalar_lea.vmem %s0, %s209
        %s211 = smul.u32 4, %s12
      $region40: #{simple_lstm_forward.1} parent=35 // pred_fallthru
        _
    $region36: #{simple_lstm_forward.1} parent=5 // pred_fallthru
      _
    %p212 = scmp.le.s32.totalorder 1, %s12
    %p213 = scmp.lt.s32.totalorder %s12, 3
    %p214 = pnand %p212, %p213
    %p215 = pneg %p214
    // Predicated region
    $region41: #{simple_lstm_forward.1} parent=5 // pred_check
      _
    $region42: #{simple_lstm_forward.1} parent=5 // pred_check_branch
      %217 = sbr.rel (%p214) target = $region44
    $region43: #{simple_lstm_forward.1} parent=5 // pred_region
      %s218 = ssub.s32 %s12, 1
      %s219 = smul.u32 4, %s17
      %p220 = scmp.lt.s32.totalorder %s219, 7
      %s221 = scalar_select %p220, %s219, 7
      %s222 = smul.addr %s221, 4
      %s223 = scalar_lea.vmem %s0, %s222
      %p224 = pneg %p38
      %p225 = pneg %p35
      %p226 = pneg %p59
      %p227 = pneg %p56
      %p228 = pneg %p80
      %p229 = pneg %p77
      %p230 = pneg %p101
      %p231 = pneg %p98
      %p232 = pneg %p122
      %p233 = pneg %p119
      %p234 = pneg %p143
      %p235 = pneg %p140
      %p236 = pneg %p169
      %p237 = pneg %p166
      %s238 = smul.u32 4, %s17
      %p239 = scmp.lt.s32.totalorder %s238, 7
      %s240 = scalar_select %p239, %s238, 7
      %s241 = smul.addr %s240, 8
      %s242 = scalar_lea.vmem %s6, %s241
      %s243 = smul.u32 4, %s17
      %p244 = scmp.lt.s32.totalorder %s243, 7
      %s245 = scalar_select %p244, %s243, 7
      %s246 = smul.addr %s245, 4
      %s247 = scalar_lea.vmem %s0, %s246
      %s248 = smul.u32 4, %s17
      %s249 = smul.u32 4, %s17
      %p250 = scmp.lt.s32.totalorder %s249, 7
      %s251 = scalar_select %p250, %s249, 7
      %s252 = smul.addr %s251, 8
      %s253 = scalar_lea.vmem %s6, %s252
      %s254 = smul.u32 4, %s17
      %p256 = scmp.eq.s32.totalorder %s17, 0
      // Predicated region
      $region45: #{simple_lstm_forward.1} parent=43 // pred_check
        %p257 = pneg %p256
      $region46: #{simple_lstm_forward.1} parent=43 // pred_check_branch
        %259 = sbr.rel (%p257) target = $region48
      $region47: #{simple_lstm_forward.1} parent=43 // pred_region
        %260 = vst [vmem:[#allocation4] sm:$0xff] 0.0
        %261 = vst [vmem:[#allocation5] sm:$0xff] 0.0
      $region48: #{simple_lstm_forward.1} parent=43 // pred_fallthru
        _
      %v262 = vld [vmem:[%s247] sm:$0xf]
      %v263 = vld [vmem:[%s247 + $0x4] sm:$0xf]
      %v264 = vld [vmem:[%s247 + $0x8] sm:$0xf]
      %v265 = vld [vmem:[%s247 + $0xc] sm:$0xf]
      %v266 = vld [vmem:[%s1] sm:$0xff]
      %v267 = vld [vmem:[%s1 + $0x8] sm:$0xff]
      %v268 = vld [vmem:[%s1 + $0x10] sm:$0xff]
      %v269 = vld [vmem:[%s1 + $0x18] sm:$0xff]
      %v270 = vld [vmem:[%s3] sm:$0xf]
      %v272 = vlaneseq
      %v273 = vshrl.u32 %v272, 7
      %v274 = vsub.s32 0, %v273
      %v275 = vrot.slane %v270, %v274
      %v276 = vlaneseq
      %v277 = vshrl.u32 %v276, 7
      %v278 = vsub.s32 1, %v277
      %v279 = vrot.slane %v270, %v278
      %v280 = vlaneseq
      %v281 = vshrl.u32 %v280, 7
      %v282 = vsub.s32 2, %v281
      %v283 = vrot.slane %v270, %v282
      %v284 = vlaneseq
      %v285 = vshrl.u32 %v284, 7
      %v286 = vsub.s32 3, %v285
      %v287 = vrot.slane %v270, %v286
      %v296 = vunpack.c.l.b16 %v262
      %v297 = vunpack.c.l.b16 %v263
      %v298 = vunpack.c.l.b16 %v264
      %v299 = vunpack.c.l.b16 %v265
      %v300 = vpack.c.b16 %v297, %v296
      %v301 = vpack.c.b16 %v299, %v298
      %v306 = vunpack.c.l.b16 %v266
      %v307 = vunpack.c.h.b16 %v266
      %v308 = vunpack.c.l.b16 %v267
      %v309 = vunpack.c.h.b16 %v267
      %v310 = vunpack.c.l.b16 %v268
      %v311 = vunpack.c.h.b16 %v268
      %v312 = vunpack.c.l.b16 %v269
      %v313 = vunpack.c.h.b16 %v269
      %v314 = vpack.c.b16 %v310, %v306
      %v315 = vpack.c.b16 %v311, %v307
      %v316 = vpack.c.b16 %v312, %v308
      %v317 = vpack.c.b16 %v313, %v309
      %vm322 = vcmask 130048
      %v324 = vsel %vm322, %v300, 0
      %v327 = vsel %vm322, %v301, 0
      %329 = vmatprep.subr.bf16.mxu0 0
      %330 = vmatpush1.bf16.msra.mxu0 0
      %331 = vmatprep.subr.bf16.mxu0 0
      %332 = vmatpush1.bf16.msra.mxu0 0
      %333 = vmatprep.subr.bf16.mxu0 0
      %334 = vmatpush1.bf16.msra.mxu0 0
      %335 = vmatprep.subr.bf16.mxu0 0
      %336 = vmatpush1.bf16.msra.mxu0 0
      %337 = vmatprep.subr.bf16.mxu0 0
      %338 = vmatpush1.bf16.msra.mxu0 0
      %339 = vmatprep.subr.bf16.mxu0 0
      %340 = vmatpush1.bf16.msra.mxu0 0
      %341 = vmatprep.subr.bf16.mxu0 0
      %342 = vmatpush1.bf16.msra.mxu0 0
      %343 = vmatprep.subr.bf16.mxu0 %v315
      %344 = vmatpush1.bf16.msra.mxu0 %v314
      %345 = vmatprep.subr.bf16.mxu0 0
      %346 = vmatpush2.bf16.msra.mxu0 0
      %347 = vmatprep.subr.bf16.mxu0 0
      %348 = vmatpush2.bf16.msra.mxu0 0
      %349 = vmatprep.subr.bf16.mxu0 0
      %350 = vmatpush2.bf16.msra.mxu0 0
      %351 = vmatprep.subr.bf16.mxu0 0
      %352 = vmatpush2.bf16.msra.mxu0 0
      %353 = vmatprep.subr.bf16.mxu0 0
      %354 = vmatpush2.bf16.msra.mxu0 0
      %355 = vmatprep.subr.bf16.mxu0 0
      %356 = vmatpush2.bf16.msra.mxu0 0
      %357 = vmatprep.subr.bf16.mxu0 0
      %358 = vmatpush2.bf16.msra.mxu0 0
      %359 = vmatprep.subr.bf16.mxu0 0
      %360 = vmatpush2.bf16.msra.mxu0 0
      %361 = vmatprep.mubr.bf16.mxu0 0
      %362 = vmatmul.mubr.bf16.gmra.mxu0 %v324
      %v363 = vpop.f32.mrf.mxu0
      %v364 = vadd.f32 %v275, %v363
      %v365 = vpop.f32.mrf.mxu0
      %v366 = vadd.f32 %v279, %v365
      %v367 = vpop.f32.mrf.mxu0
      %v368 = vadd.f32 %v275, %v367
      %v369 = vpop.f32.mrf.mxu0
      %v370 = vadd.f32 %v279, %v369
      %371 = vmatprep.mubr.bf16.mxu0 0
      %372 = vmatmul.mubr.bf16.gmra.mxu0 %v327
      %v373 = vpop.f32.mrf.mxu0
      %v374 = vadd.f32 %v275, %v373
      %v375 = vpop.f32.mrf.mxu0
      %v376 = vadd.f32 %v279, %v375
      %v377 = vpop.f32.mrf.mxu0
      %v378 = vadd.f32 %v275, %v377
      %v379 = vpop.f32.mrf.mxu0
      %v380 = vadd.f32 %v279, %v379
      %381 = vdwg.mxu0
      %382 = vmatprep.subr.bf16.mxu0 0
      %383 = vmatpush1.bf16.msra.mxu0 0
      %384 = vmatprep.subr.bf16.mxu0 0
      %385 = vmatpush1.bf16.msra.mxu0 0
      %386 = vmatprep.subr.bf16.mxu0 0
      %387 = vmatpush1.bf16.msra.mxu0 0
      %388 = vmatprep.subr.bf16.mxu0 0
      %389 = vmatpush1.bf16.msra.mxu0 0
      %390 = vmatprep.subr.bf16.mxu0 0
      %391 = vmatpush1.bf16.msra.mxu0 0
      %392 = vmatprep.subr.bf16.mxu0 0
      %393 = vmatpush1.bf16.msra.mxu0 0
      %394 = vmatprep.subr.bf16.mxu0 0
      %395 = vmatpush1.bf16.msra.mxu0 0
      %396 = vmatprep.subr.bf16.mxu0 %v317
      %397 = vmatpush1.bf16.msra.mxu0 %v316
      %398 = vmatprep.subr.bf16.mxu0 0
      %399 = vmatpush2.bf16.msra.mxu0 0
      %400 = vmatprep.subr.bf16.mxu0 0
      %401 = vmatpush2.bf16.msra.mxu0 0
      %402 = vmatprep.subr.bf16.mxu0 0
      %403 = vmatpush2.bf16.msra.mxu0 0
      %404 = vmatprep.subr.bf16.mxu0 0
      %405 = vmatpush2.bf16.msra.mxu0 0
      %406 = vmatprep.subr.bf16.mxu0 0
      %407 = vmatpush2.bf16.msra.mxu0 0
      %408 = vmatprep.subr.bf16.mxu0 0
      %409 = vmatpush2.bf16.msra.mxu0 0
      %410 = vmatprep.subr.bf16.mxu0 0
      %411 = vmatpush2.bf16.msra.mxu0 0
      %412 = vmatprep.subr.bf16.mxu0 0
      %413 = vmatpush2.bf16.msra.mxu0 0
      %414 = vmatprep.mubr.bf16.mxu0 0
      %415 = vmatmul.mubr.bf16.gmra.mxu0 %v324
      %v416 = vpop.f32.mrf.mxu0
      %v417 = vadd.f32 %v283, %v416
      %v418 = vpop.f32.mrf.mxu0
      %v419 = vadd.f32 %v287, %v418
      %v420 = vpop.f32.mrf.mxu0
      %v421 = vadd.f32 %v283, %v420
      %v422 = vpop.f32.mrf.mxu0
      %v423 = vadd.f32 %v287, %v422
      %424 = vmatprep.mubr.bf16.mxu0 0
      %425 = vmatmul.mubr.bf16.gmra.mxu0 %v327
      %v426 = vpop.f32.mrf.mxu0
      %v427 = vadd.f32 %v283, %v426
      %v428 = vpop.f32.mrf.mxu0
      %v429 = vadd.f32 %v287, %v428
      %v430 = vpop.f32.mrf.mxu0
      %v431 = vadd.f32 %v283, %v430
      %v432 = vpop.f32.mrf.mxu0
      %v433 = vadd.f32 %v287, %v432
      %434 = vdwg.mxu0
      %v435 = vpack.c.bf16 %v368, %v364
      %v436 = vpack.c.bf16 %v370, %v366
      %v437 = vpack.c.bf16 %v421, %v417
      %v438 = vpack.c.bf16 %v423, %v419
      %v439 = vpack.c.bf16 %v378, %v374
      %v440 = vpack.c.bf16 %v380, %v376
      %v441 = vpack.c.bf16 %v431, %v427
      %v442 = vpack.c.bf16 %v433, %v429
      %v451 = vunpack.c.l.b16 %v435
      %v452 = vunpack.c.l.b16 %v436
      %v453 = vunpack.c.l.b16 %v437
      %v454 = vunpack.c.l.b16 %v438
      %v455 = vunpack.c.h.b16 %v435
      %v456 = vunpack.c.h.b16 %v436
      %v457 = vunpack.c.h.b16 %v437
      %v458 = vunpack.c.h.b16 %v438
      %v459 = vunpack.c.l.b16 %v439
      %v460 = vunpack.c.l.b16 %v440
      %v461 = vunpack.c.l.b16 %v441
      %v462 = vunpack.c.l.b16 %v442
      %v463 = vunpack.c.h.b16 %v439
      %v464 = vunpack.c.h.b16 %v440
      %v465 = vunpack.c.h.b16 %v441
      %v466 = vunpack.c.h.b16 %v442
      %v467 = vpack.c.b16 %v452, %v451
      %v468 = vpack.c.b16 %v454, %v453
      %v469 = vpack.c.b16 %v456, %v455
      %v470 = vpack.c.b16 %v458, %v457
      %v471 = vpack.c.b16 %v460, %v459
      %v472 = vpack.c.b16 %v462, %v461
      %v473 = vpack.c.b16 %v464, %v463
      %v474 = vpack.c.b16 %v466, %v465
      %483 = vst [vmem:[#allocation2] sm:$0xff] %v467
      %484 = vst [vmem:[#allocation2 + $0x8] sm:$0xff] %v468
      %485 = vst [vmem:[#allocation2 + $0x10] sm:$0xff] %v469
      %486 = vst [vmem:[#allocation2 + $0x18] sm:$0xff] %v470
      %487 = vst [vmem:[#allocation2 + $0x20] sm:$0xff] %v471
      %488 = vst [vmem:[#allocation2 + $0x28] sm:$0xff] %v472
      %489 = vst [vmem:[#allocation2 + $0x30] sm:$0xff] %v473
      %490 = vst [vmem:[#allocation2 + $0x38] sm:$0xff] %v474
      %v491 = vld [vmem:[%s2] sm:$0xff]
      %v492 = vld [vmem:[%s2 + $0x8] sm:$0xff]
      %v493 = vld [vmem:[%s2 + $0x10] sm:$0xff]
      %v494 = vld [vmem:[%s2 + $0x18] sm:$0xff]
      %v495 = vld [vmem:[%s2 + $0x20] sm:$0xff]
      %v496 = vld [vmem:[%s2 + $0x28] sm:$0xff]
      %v497 = vld [vmem:[%s2 + $0x30] sm:$0xff]
      %v498 = vld [vmem:[%s2 + $0x38] sm:$0xff]
      %v499 = vld [vmem:[%s2 + $0x40] sm:$0xff]
      %v500 = vld [vmem:[%s2 + $0x48] sm:$0xff]
      %v501 = vld [vmem:[%s2 + $0x50] sm:$0xff]
      %v502 = vld [vmem:[%s2 + $0x58] sm:$0xff]
      %v503 = vld [vmem:[%s2 + $0x60] sm:$0xff]
      %v504 = vld [vmem:[%s2 + $0x68] sm:$0xff]
      %v505 = vld [vmem:[%s2 + $0x70] sm:$0xff]
      %v506 = vld [vmem:[%s2 + $0x78] sm:$0xff]
      %v507 = vld [vmem:[%s2 + $0x80] sm:$0xff]
      %v508 = vld [vmem:[%s2 + $0x88] sm:$0xff]
      %v509 = vld [vmem:[%s2 + $0x90] sm:$0xff]
      %v510 = vld [vmem:[%s2 + $0x98] sm:$0xff]
      %v511 = vld [vmem:[%s2 + $0xa0] sm:$0xff]
      %v512 = vld [vmem:[%s2 + $0xa8] sm:$0xff]
      %v513 = vld [vmem:[%s2 + $0xb0] sm:$0xff]
      %v514 = vld [vmem:[%s2 + $0xb8] sm:$0xff]
      %v515 = vld [vmem:[%s2 + $0xc0] sm:$0xff]
      %v516 = vld [vmem:[%s2 + $0xc8] sm:$0xff]
      %v517 = vld [vmem:[%s2 + $0xd0] sm:$0xff]
      %v518 = vld [vmem:[%s2 + $0xd8] sm:$0xff]
      %v519 = vld [vmem:[%s2 + $0xe0] sm:$0xff]
      %v520 = vld [vmem:[%s2 + $0xe8] sm:$0xff]
      %v521 = vld [vmem:[%s2 + $0xf0] sm:$0xff]
      %v522 = vld [vmem:[%s2 + $0xf8] sm:$0xff]
      %v523 = vld [vmem:[#allocation4] sm:$0xff]
      %v524 = vld [vmem:[#allocation5] sm:$0xff]
      %s525 = smul.u32 0, 4
      %s526 = smul.addr %s525, 4
      %s527 = scalar_lea.vmem [#allocation2], %s526
      %v528 = vld [vmem:[%s527] sm:$0xff]
      %v529 = vld [vmem:[%s527 + $0x8] sm:$0xff]
      %v530 = vunpack.c.l.bf16 %v528
      %v531 = vunpack.c.h.bf16 %v528
      %v532 = vunpack.c.l.bf16 %v529
      %v533 = vunpack.c.h.bf16 %v529
      %v534 = vpack.c.bf16 %v523, %v523
      %v567 = vunpack.c.l.b16 %v491
      %v568 = vunpack.c.h.b16 %v491
      %v569 = vunpack.c.l.b16 %v492
      %v570 = vunpack.c.h.b16 %v492
      %v571 = vunpack.c.l.b16 %v493
      %v572 = vunpack.c.h.b16 %v493
      %v573 = vunpack.c.l.b16 %v494
      %v574 = vunpack.c.h.b16 %v494
      %v575 = vunpack.c.l.b16 %v495
      %v576 = vunpack.c.h.b16 %v495
      %v577 = vunpack.c.l.b16 %v496
      %v578 = vunpack.c.h.b16 %v496
      %v579 = vunpack.c.l.b16 %v497
      %v580 = vunpack.c.h.b16 %v497
      %v581 = vunpack.c.l.b16 %v498
      %v582 = vunpack.c.h.b16 %v498
      %v583 = vunpack.c.l.b16 %v499
      %v584 = vunpack.c.h.b16 %v499
      %v585 = vunpack.c.l.b16 %v500
      %v586 = vunpack.c.h.b16 %v500
      %v587 = vunpack.c.l.b16 %v501
      %v588 = vunpack.c.h.b16 %v501
      %v589 = vunpack.c.l.b16 %v502
      %v590 = vunpack.c.h.b16 %v502
      %v591 = vunpack.c.l.b16 %v503
      %v592 = vunpack.c.h.b16 %v503
      %v593 = vunpack.c.l.b16 %v504
      %v594 = vunpack.c.h.b16 %v504
      %v595 = vunpack.c.l.b16 %v505
      %v596 = vunpack.c.h.b16 %v505
      %v597 = vunpack.c.l.b16 %v506
      %v598 = vunpack.c.h.b16 %v506
      %v599 = vunpack.c.l.b16 %v507
      %v600 = vunpack.c.h.b16 %v507
      %v601 = vunpack.c.l.b16 %v508
      %v602 = vunpack.c.h.b16 %v508
      %v603 = vunpack.c.l.b16 %v509
      %v604 = vunpack.c.h.b16 %v509
      %v605 = vunpack.c.l.b16 %v510
      %v606 = vunpack.c.h.b16 %v510
      %v607 = vunpack.c.l.b16 %v511
      %v608 = vunpack.c.h.b16 %v511
      %v609 = vunpack.c.l.b16 %v512
      %v610 = vunpack.c.h.b16 %v512
      %v611 = vunpack.c.l.b16 %v513
      %v612 = vunpack.c.h.b16 %v513
      %v613 = vunpack.c.l.b16 %v514
      %v614 = vunpack.c.h.b16 %v514
      %v615 = vunpack.c.l.b16 %v515
      %v616 = vunpack.c.h.b16 %v515
      %v617 = vunpack.c.l.b16 %v516
      %v618 = vunpack.c.h.b16 %v516
      %v619 = vunpack.c.l.b16 %v517
      %v620 = vunpack.c.h.b16 %v517
      %v621 = vunpack.c.l.b16 %v518
      %v622 = vunpack.c.h.b16 %v518
      %v623 = vunpack.c.l.b16 %v519
      %v624 = vunpack.c.h.b16 %v519
      %v625 = vunpack.c.l.b16 %v520
      %v626 = vunpack.c.h.b16 %v520
      %v627 = vunpack.c.l.b16 %v521
      %v628 = vunpack.c.h.b16 %v521
      %v629 = vunpack.c.l.b16 %v522
      %v630 = vunpack.c.h.b16 %v522
      %v631 = vpack.c.b16 %v571, %v567
      %v632 = vpack.c.b16 %v572, %v568
      %v633 = vpack.c.b16 %v573, %v569
      %v634 = vpack.c.b16 %v574, %v570
      %v635 = vpack.c.b16 %v579, %v575
      %v636 = vpack.c.b16 %v580, %v576
      %v637 = vpack.c.b16 %v581, %v577
      %v638 = vpack.c.b16 %v582, %v578
      %v639 = vpack.c.b16 %v587, %v583
      %v640 = vpack.c.b16 %v588, %v584
      %v641 = vpack.c.b16 %v589, %v585
      %v642 = vpack.c.b16 %v590, %v586
      %v643 = vpack.c.b16 %v595, %v591
      %v644 = vpack.c.b16 %v596, %v592
      %v645 = vpack.c.b16 %v597, %v593
      %v646 = vpack.c.b16 %v598, %v594
      %v647 = vpack.c.b16 %v603, %v599
      %v648 = vpack.c.b16 %v604, %v600
      %v649 = vpack.c.b16 %v605, %v601
      %v650 = vpack.c.b16 %v606, %v602
      %v651 = vpack.c.b16 %v611, %v607
      %v652 = vpack.c.b16 %v612, %v608
      %v653 = vpack.c.b16 %v613, %v609
      %v654 = vpack.c.b16 %v614, %v610
      %v655 = vpack.c.b16 %v619, %v615
      %v656 = vpack.c.b16 %v620, %v616
      %v657 = vpack.c.b16 %v621, %v617
      %v658 = vpack.c.b16 %v622, %v618
      %v659 = vpack.c.b16 %v627, %v623
      %v660 = vpack.c.b16 %v628, %v624
      %v661 = vpack.c.b16 %v629, %v625
      %v662 = vpack.c.b16 %v630, %v626
      %695 = vmatprep.subr.bf16.mxu0 %v660
      %696 = vmatpush1.bf16.msra.mxu0 %v659
      %697 = vmatprep.subr.bf16.mxu0 %v656
      %698 = vmatpush1.bf16.msra.mxu0 %v655
      %699 = vmatprep.subr.bf16.mxu0 %v652
      %700 = vmatpush1.bf16.msra.mxu0 %v651
      %701 = vmatprep.subr.bf16.mxu0 %v648
      %702 = vmatpush1.bf16.msra.mxu0 %v647
      %703 = vmatprep.subr.bf16.mxu0 %v644
      %704 = vmatpush1.bf16.msra.mxu0 %v643
      %705 = vmatprep.subr.bf16.mxu0 %v640
      %706 = vmatpush1.bf16.msra.mxu0 %v639
      %707 = vmatprep.subr.bf16.mxu0 %v636
      %708 = vmatpush1.bf16.msra.mxu0 %v635
      %709 = vmatprep.subr.bf16.mxu0 %v632
      %710 = vmatpush1.bf16.msra.mxu0 %v631
      %711 = vmatprep.subr.bf16.mxu0 0
      %712 = vmatpush2.bf16.msra.mxu0 0
      %713 = vmatprep.subr.bf16.mxu0 0
      %714 = vmatpush2.bf16.msra.mxu0 0
      %715 = vmatprep.subr.bf16.mxu0 0
      %716 = vmatpush2.bf16.msra.mxu0 0
      %717 = vmatprep.subr.bf16.mxu0 0
      %718 = vmatpush2.bf16.msra.mxu0 0
      %719 = vmatprep.subr.bf16.mxu0 0
      %720 = vmatpush2.bf16.msra.mxu0 0
      %721 = vmatprep.subr.bf16.mxu0 0
      %722 = vmatpush2.bf16.msra.mxu0 0
      %723 = vmatprep.subr.bf16.mxu0 0
      %724 = vmatpush2.bf16.msra.mxu0 0
      %725 = vmatprep.subr.bf16.mxu0 0
      %726 = vmatpush2.bf16.msra.mxu0 0
      %727 = vmatprep.mubr.bf16.mxu0 0
      %728 = vmatmul.mubr.bf16.gmra.mxu0 %v534
      %v729 = vpop.f32.mrf.mxu0
      %v730 = vadd.f32 0.0, %v729
      %v731 = vpop.f32.mrf.mxu0
      %v732 = vadd.f32 0.0, %v731
      %v733 = vpop.f32.mrf.mxu0
      %v734 = vpop.f32.mrf.mxu0
      %735 = vdwg.mxu0
      %736 = vmatprep.subr.bf16.mxu0 %v662
      %737 = vmatpush1.bf16.msra.mxu0 %v661
      %738 = vmatprep.subr.bf16.mxu0 %v658
      %739 = vmatpush1.bf16.msra.mxu0 %v657
      %740 = vmatprep.subr.bf16.mxu0 %v654
      %741 = vmatpush1.bf16.msra.mxu0 %v653
      %742 = vmatprep.subr.bf16.mxu0 %v650
      %743 = vmatpush1.bf16.msra.mxu0 %v649
      %744 = vmatprep.subr.bf16.mxu0 %v646
      %745 = vmatpush1.bf16.msra.mxu0 %v645
      %746 = vmatprep.subr.bf16.mxu0 %v642
      %747 = vmatpush1.bf16.msra.mxu0 %v641
      %748 = vmatprep.subr.bf16.mxu0 %v638
      %749 = vmatpush1.bf16.msra.mxu0 %v637
      %750 = vmatprep.subr.bf16.mxu0 %v634
      %751 = vmatpush1.bf16.msra.mxu0 %v633
      %752 = vmatprep.subr.bf16.mxu0 0
      %753 = vmatpush2.bf16.msra.mxu0 0
      %754 = vmatprep.subr.bf16.mxu0 0
      %755 = vmatpush2.bf16.msra.mxu0 0
      %756 = vmatprep.subr.bf16.mxu0 0
      %757 = vmatpush2.bf16.msra.mxu0 0
      %758 = vmatprep.subr.bf16.mxu0 0
      %759 = vmatpush2.bf16.msra.mxu0 0
      %760 = vmatprep.subr.bf16.mxu0 0
      %761 = vmatpush2.bf16.msra.mxu0 0
      %762 = vmatprep.subr.bf16.mxu0 0
      %763 = vmatpush2.bf16.msra.mxu0 0
      %764 = vmatprep.subr.bf16.mxu0 0
      %765 = vmatpush2.bf16.msra.mxu0 0
      %766 = vmatprep.subr.bf16.mxu0 0
      %767 = vmatpush2.bf16.msra.mxu0 0
      %768 = vmatprep.mubr.bf16.mxu0 0
      %769 = vmatmul.mubr.bf16.gmra.mxu0 %v534
      %v770 = vpop.f32.mrf.mxu0
      %v771 = vadd.f32 0.0, %v770
      %v772 = vpop.f32.mrf.mxu0
      %v773 = vadd.f32 0.0, %v772
      %v774 = vpop.f32.mrf.mxu0
      %v775 = vpop.f32.mrf.mxu0
      %776 = vdwg.mxu0
      %v777 = vadd.f32 %v530, %v730
      %v778 = vadd.f32 %v531, %v732
      %v779 = vadd.f32 %v532, %v771
      %v780 = vadd.f32 %v533, %v773
      %v781 = vxor.u32 %v777, 2147483648
      %v782 = vxor.u32 %v778, 2147483648
      %v783 = vxor.u32 %v779, 2147483648
      %v784 = vmul.f32 %v781, 1.442695
      %v785 = vpow.pop %v784
      %v786 = vmul.f32 %v782, 1.442695
      %v787 = vpow.pop %v786
      %v788 = vmul.f32 %v783, 1.442695
      %v789 = vpow.pop %v788
      %v790 = vadd.f32 %v785, 1.0
      %v791 = vadd.f32 %v787, 1.0
      %v792 = vadd.f32 %v789, 1.0
      %v793 = vrcp.pop %v790
      %v794 = vmul.f32 1.0, %v793
      %v795 = vrcp.pop %v791
      %v796 = vmul.f32 1.0, %v795
      %v797 = vrcp.pop %v792
      %v798 = vmul.f32 1.0, %v797
      %v799 = vtanh.pop %v780
      %v800 = vmul.f32 %v796, %v524
      %v801 = vmul.f32 %v794, %v799
      %v802 = vadd.f32 %v800, %v801
      %v803 = vtanh.pop %v802
      %v804 = vmul.f32 %v798, %v803
      %v805 = vpack.c.bf16 %v804, %v804
      %806 = vst [vmem:[#allocation3] sm:$0xf] %v805
      %s807 = smul.u32 1, 4
      %s808 = smul.addr %s807, 4
      %s809 = scalar_lea.vmem [#allocation2], %s808
      %v810 = vld [vmem:[%s809] sm:$0xff]
      %v811 = vld [vmem:[%s809 + $0x8] sm:$0xff]
      %v812 = vunpack.c.l.bf16 %v810
      %v813 = vunpack.c.h.bf16 %v810
      %v814 = vunpack.c.l.bf16 %v811
      %v815 = vunpack.c.h.bf16 %v811
      %816 = vmatprep.subr.bf16.mxu0 %v660
      %817 = vmatpush1.bf16.msra.mxu0 %v659
      %818 = vmatprep.subr.bf16.mxu0 %v656
      %819 = vmatpush1.bf16.msra.mxu0 %v655
      %820 = vmatprep.subr.bf16.mxu0 %v652
      %821 = vmatpush1.bf16.msra.mxu0 %v651
      %822 = vmatprep.subr.bf16.mxu0 %v648
      %823 = vmatpush1.bf16.msra.mxu0 %v647
      %824 = vmatprep.subr.bf16.mxu0 %v644
      %825 = vmatpush1.bf16.msra.mxu0 %v643
      %826 = vmatprep.subr.bf16.mxu0 %v640
      %827 = vmatpush1.bf16.msra.mxu0 %v639
      %828 = vmatprep.subr.bf16.mxu0 %v636
      %829 = vmatpush1.bf16.msra.mxu0 %v635
      %830 = vmatprep.subr.bf16.mxu0 %v632
      %831 = vmatpush1.bf16.msra.mxu0 %v631
      %832 = vmatprep.subr.bf16.mxu0 0
      %833 = vmatpush2.bf16.msra.mxu0 0
      %834 = vmatprep.subr.bf16.mxu0 0
      %835 = vmatpush2.bf16.msra.mxu0 0
      %836 = vmatprep.subr.bf16.mxu0 0
      %837 = vmatpush2.bf16.msra.mxu0 0
      %838 = vmatprep.subr.bf16.mxu0 0
      %839 = vmatpush2.bf16.msra.mxu0 0
      %840 = vmatprep.subr.bf16.mxu0 0
      %841 = vmatpush2.bf16.msra.mxu0 0
      %842 = vmatprep.subr.bf16.mxu0 0
      %843 = vmatpush2.bf16.msra.mxu0 0
      %844 = vmatprep.subr.bf16.mxu0 0
      %845 = vmatpush2.bf16.msra.mxu0 0
      %846 = vmatprep.subr.bf16.mxu0 0
      %847 = vmatpush2.bf16.msra.mxu0 0
      %848 = vmatprep.mubr.bf16.mxu0 0
      %849 = vmatmul.mubr.bf16.gmra.mxu0 %v805
      %v850 = vpop.f32.mrf.mxu0
      %v851 = vadd.f32 0.0, %v850
      %v852 = vpop.f32.mrf.mxu0
      %v853 = vadd.f32 0.0, %v852
      %v854 = vpop.f32.mrf.mxu0
      %v855 = vpop.f32.mrf.mxu0
      %856 = vdwg.mxu0
      %857 = vmatprep.subr.bf16.mxu0 %v662
      %858 = vmatpush1.bf16.msra.mxu0 %v661
      %859 = vmatprep.subr.bf16.mxu0 %v658
      %860 = vmatpush1.bf16.msra.mxu0 %v657
      %861 = vmatprep.subr.bf16.mxu0 %v654
      %862 = vmatpush1.bf16.msra.mxu0 %v653
      %863 = vmatprep.subr.bf16.mxu0 %v650
      %864 = vmatpush1.bf16.msra.mxu0 %v649
      %865 = vmatprep.subr.bf16.mxu0 %v646
      %866 = vmatpush1.bf16.msra.mxu0 %v645
      %867 = vmatprep.subr.bf16.mxu0 %v642
      %868 = vmatpush1.bf16.msra.mxu0 %v641
      %869 = vmatprep.subr.bf16.mxu0 %v638
      %870 = vmatpush1.bf16.msra.mxu0 %v637
      %871 = vmatprep.subr.bf16.mxu0 %v634
      %872 = vmatpush1.bf16.msra.mxu0 %v633
      %873 = vmatprep.subr.bf16.mxu0 0
      %874 = vmatpush2.bf16.msra.mxu0 0
      %875 = vmatprep.subr.bf16.mxu0 0
      %876 = vmatpush2.bf16.msra.mxu0 0
      %877 = vmatprep.subr.bf16.mxu0 0
      %878 = vmatpush2.bf16.msra.mxu0 0
      %879 = vmatprep.subr.bf16.mxu0 0
      %880 = vmatpush2.bf16.msra.mxu0 0
      %881 = vmatprep.subr.bf16.mxu0 0
      %882 = vmatpush2.bf16.msra.mxu0 0
      %883 = vmatprep.subr.bf16.mxu0 0
      %884 = vmatpush2.bf16.msra.mxu0 0
      %885 = vmatprep.subr.bf16.mxu0 0
      %886 = vmatpush2.bf16.msra.mxu0 0
      %887 = vmatprep.subr.bf16.mxu0 0
      %888 = vmatpush2.bf16.msra.mxu0 0
      %889 = vmatprep.mubr.bf16.mxu0 0
      %890 = vmatmul.mubr.bf16.gmra.mxu0 %v805
      %v891 = vpop.f32.mrf.mxu0
      %v892 = vadd.f32 0.0, %v891
      %v893 = vpop.f32.mrf.mxu0
      %v894 = vadd.f32 0.0, %v893
      %v895 = vpop.f32.mrf.mxu0
      %v896 = vpop.f32.mrf.mxu0
      %897 = vdwg.mxu0
      %v898 = vadd.f32 %v812, %v851
      %v899 = vadd.f32 %v813, %v853
      %v900 = vadd.f32 %v814, %v892
      %v901 = vadd.f32 %v815, %v894
      %v902 = vxor.u32 %v898, 2147483648
      %v903 = vxor.u32 %v899, 2147483648
      %v904 = vxor.u32 %v900, 2147483648
      %v905 = vmul.f32 %v902, 1.442695
      %v906 = vpow.pop %v905
      %v907 = vmul.f32 %v903, 1.442695
      %v908 = vpow.pop %v907
      %v909 = vmul.f32 %v904, 1.442695
      %v910 = vpow.pop %v909
      %v911 = vadd.f32 %v906, 1.0
      %v912 = vadd.f32 %v908, 1.0
      %v913 = vadd.f32 %v910, 1.0
      %v914 = vrcp.pop %v911
      %v915 = vmul.f32 1.0, %v914
      %v916 = vrcp.pop %v912
      %v917 = vmul.f32 1.0, %v916
      %v918 = vrcp.pop %v913
      %v919 = vmul.f32 1.0, %v918
      %v920 = vtanh.pop %v901
      %v921 = vmul.f32 %v917, %v802
      %v922 = vmul.f32 %v915, %v920
      %v923 = vadd.f32 %v921, %v922
      %v924 = vtanh.pop %v923
      %v925 = vmul.f32 %v919, %v924
      %v926 = vpack.c.bf16 %v925, %v925
      %s927 = scalar_lea.vmem [#allocation3], 4
      %928 = vst [vmem:[%s927] sm:$0xf] %v926
      %s929 = smul.u32 2, 4
      %s930 = smul.addr %s929, 4
      %s931 = scalar_lea.vmem [#allocation2], %s930
      %v932 = vld [vmem:[%s931] sm:$0xff]
      %v933 = vld [vmem:[%s931 + $0x8] sm:$0xff]
      %v934 = vunpack.c.l.bf16 %v932
      %v935 = vunpack.c.h.bf16 %v932
      %v936 = vunpack.c.l.bf16 %v933
      %v937 = vunpack.c.h.bf16 %v933
      %938 = vmatprep.subr.bf16.mxu0 %v660
      %939 = vmatpush1.bf16.msra.mxu0 %v659
      %940 = vmatprep.subr.bf16.mxu0 %v656
      %941 = vmatpush1.bf16.msra.mxu0 %v655
      %942 = vmatprep.subr.bf16.mxu0 %v652
      %943 = vmatpush1.bf16.msra.mxu0 %v651
      %944 = vmatprep.subr.bf16.mxu0 %v648
      %945 = vmatpush1.bf16.msra.mxu0 %v647
      %946 = vmatprep.subr.bf16.mxu0 %v644
      %947 = vmatpush1.bf16.msra.mxu0 %v643
      %948 = vmatprep.subr.bf16.mxu0 %v640
      %949 = vmatpush1.bf16.msra.mxu0 %v639
      %950 = vmatprep.subr.bf16.mxu0 %v636
      %951 = vmatpush1.bf16.msra.mxu0 %v635
      %952 = vmatprep.subr.bf16.mxu0 %v632
      %953 = vmatpush1.bf16.msra.mxu0 %v631
      %954 = vmatprep.subr.bf16.mxu0 0
      %955 = vmatpush2.bf16.msra.mxu0 0
      %956 = vmatprep.subr.bf16.mxu0 0
      %957 = vmatpush2.bf16.msra.mxu0 0
      %958 = vmatprep.subr.bf16.mxu0 0
      %959 = vmatpush2.bf16.msra.mxu0 0
      %960 = vmatprep.subr.bf16.mxu0 0
      %961 = vmatpush2.bf16.msra.mxu0 0
      %962 = vmatprep.subr.bf16.mxu0 0
      %963 = vmatpush2.bf16.msra.mxu0 0
      %964 = vmatprep.subr.bf16.mxu0 0
      %965 = vmatpush2.bf16.msra.mxu0 0
      %966 = vmatprep.subr.bf16.mxu0 0
      %967 = vmatpush2.bf16.msra.mxu0 0
      %968 = vmatprep.subr.bf16.mxu0 0
      %969 = vmatpush2.bf16.msra.mxu0 0
      %970 = vmatprep.mubr.bf16.mxu0 0
      %971 = vmatmul.mubr.bf16.gmra.mxu0 %v926
      %v972 = vpop.f32.mrf.mxu0
      %v973 = vadd.f32 0.0, %v972
      %v974 = vpop.f32.mrf.mxu0
      %v975 = vadd.f32 0.0, %v974
      %v976 = vpop.f32.mrf.mxu0
      %v977 = vpop.f32.mrf.mxu0
      %978 = vdwg.mxu0
      %979 = vmatprep.subr.bf16.mxu0 %v662
      %980 = vmatpush1.bf16.msra.mxu0 %v661
      %981 = vmatprep.subr.bf16.mxu0 %v658
      %982 = vmatpush1.bf16.msra.mxu0 %v657
      %983 = vmatprep.subr.bf16.mxu0 %v654
      %984 = vmatpush1.bf16.msra.mxu0 %v653
      %985 = vmatprep.subr.bf16.mxu0 %v650
      %986 = vmatpush1.bf16.msra.mxu0 %v649
      %987 = vmatprep.subr.bf16.mxu0 %v646
      %988 = vmatpush1.bf16.msra.mxu0 %v645
      %989 = vmatprep.subr.bf16.mxu0 %v642
      %990 = vmatpush1.bf16.msra.mxu0 %v641
      %991 = vmatprep.subr.bf16.mxu0 %v638
      %992 = vmatpush1.bf16.msra.mxu0 %v637
      %993 = vmatprep.subr.bf16.mxu0 %v634
      %994 = vmatpush1.bf16.msra.mxu0 %v633
      %995 = vmatprep.subr.bf16.mxu0 0
      %996 = vmatpush2.bf16.msra.mxu0 0
      %997 = vmatprep.subr.bf16.mxu0 0
      %998 = vmatpush2.bf16.msra.mxu0 0
      %999 = vmatprep.subr.bf16.mxu0 0
      %1000 = vmatpush2.bf16.msra.mxu0 0
      %1001 = vmatprep.subr.bf16.mxu0 0
      %1002 = vmatpush2.bf16.msra.mxu0 0
      %1003 = vmatprep.subr.bf16.mxu0 0
      %1004 = vmatpush2.bf16.msra.mxu0 0
      %1005 = vmatprep.subr.bf16.mxu0 0
      %1006 = vmatpush2.bf16.msra.mxu0 0
      %1007 = vmatprep.subr.bf16.mxu0 0
      %1008 = vmatpush2.bf16.msra.mxu0 0
      %1009 = vmatprep.subr.bf16.mxu0 0
      %1010 = vmatpush2.bf16.msra.mxu0 0
      %1011 = vmatprep.mubr.bf16.mxu0 0
      %1012 = vmatmul.mubr.bf16.gmra.mxu0 %v926
      %v1013 = vpop.f32.mrf.mxu0
      %v1014 = vadd.f32 0.0, %v1013
      %v1015 = vpop.f32.mrf.mxu0
      %v1016 = vadd.f32 0.0, %v1015
      %v1017 = vpop.f32.mrf.mxu0
      %v1018 = vpop.f32.mrf.mxu0
      %1019 = vdwg.mxu0
      %v1020 = vadd.f32 %v934, %v973
      %v1021 = vadd.f32 %v935, %v975
      %v1022 = vadd.f32 %v936, %v1014
      %v1023 = vadd.f32 %v937, %v1016
      %v1024 = vxor.u32 %v1020, 2147483648
      %v1025 = vxor.u32 %v1021, 2147483648
      %v1026 = vxor.u32 %v1022, 2147483648
      %v1027 = vmul.f32 %v1024, 1.442695
      %v1028 = vpow.pop %v1027
      %v1029 = vmul.f32 %v1025, 1.442695
      %v1030 = vpow.pop %v1029
      %v1031 = vmul.f32 %v1026, 1.442695
      %v1032 = vpow.pop %v1031
      %v1033 = vadd.f32 %v1028, 1.0
      %v1034 = vadd.f32 %v1030, 1.0
      %v1035 = vadd.f32 %v1032, 1.0
      %v1036 = vrcp.pop %v1033
      %v1037 = vmul.f32 1.0, %v1036
      %v1038 = vrcp.pop %v1034
      %v1039 = vmul.f32 1.0, %v1038
      %v1040 = vrcp.pop %v1035
      %v1041 = vmul.f32 1.0, %v1040
      %v1042 = vtanh.pop %v1023
      %v1043 = vmul.f32 %v1039, %v923
      %v1044 = vmul.f32 %v1037, %v1042
      %v1045 = vadd.f32 %v1043, %v1044
      %v1046 = vtanh.pop %v1045
      %v1047 = vmul.f32 %v1041, %v1046
      %v1048 = vpack.c.bf16 %v1047, %v1047
      %s1049 = scalar_lea.vmem [#allocation3], 8
      %1050 = vst [vmem:[%s1049] sm:$0xf] %v1048
      %s1051 = smul.u32 3, 4
      %s1052 = smul.addr %s1051, 4
      %s1053 = scalar_lea.vmem [#allocation2], %s1052
      %v1054 = vld [vmem:[%s1053] sm:$0xff]
      %v1055 = vld [vmem:[%s1053 + $0x8] sm:$0xff]
      %v1056 = vunpack.c.l.bf16 %v1054
      %v1057 = vunpack.c.h.bf16 %v1054
      %v1058 = vunpack.c.l.bf16 %v1055
      %v1059 = vunpack.c.h.bf16 %v1055
      %1060 = vmatprep.subr.bf16.mxu0 %v660
      %1061 = vmatpush1.bf16.msra.mxu0 %v659
      %1062 = vmatprep.subr.bf16.mxu0 %v656
      %1063 = vmatpush1.bf16.msra.mxu0 %v655
      %1064 = vmatprep.subr.bf16.mxu0 %v652
      %1065 = vmatpush1.bf16.msra.mxu0 %v651
      %1066 = vmatprep.subr.bf16.mxu0 %v648
      %1067 = vmatpush1.bf16.msra.mxu0 %v647
      %1068 = vmatprep.subr.bf16.mxu0 %v644
      %1069 = vmatpush1.bf16.msra.mxu0 %v643
      %1070 = vmatprep.subr.bf16.mxu0 %v640
      %1071 = vmatpush1.bf16.msra.mxu0 %v639
      %1072 = vmatprep.subr.bf16.mxu0 %v636
      %1073 = vmatpush1.bf16.msra.mxu0 %v635
      %1074 = vmatprep.subr.bf16.mxu0 %v632
      %1075 = vmatpush1.bf16.msra.mxu0 %v631
      %1076 = vmatprep.subr.bf16.mxu0 0
      %1077 = vmatpush2.bf16.msra.mxu0 0
      %1078 = vmatprep.subr.bf16.mxu0 0
      %1079 = vmatpush2.bf16.msra.mxu0 0
      %1080 = vmatprep.subr.bf16.mxu0 0
      %1081 = vmatpush2.bf16.msra.mxu0 0
      %1082 = vmatprep.subr.bf16.mxu0 0
      %1083 = vmatpush2.bf16.msra.mxu0 0
      %1084 = vmatprep.subr.bf16.mxu0 0
      %1085 = vmatpush2.bf16.msra.mxu0 0
      %1086 = vmatprep.subr.bf16.mxu0 0
      %1087 = vmatpush2.bf16.msra.mxu0 0
      %1088 = vmatprep.subr.bf16.mxu0 0
      %1089 = vmatpush2.bf16.msra.mxu0 0
      %1090 = vmatprep.subr.bf16.mxu0 0
      %1091 = vmatpush2.bf16.msra.mxu0 0
      %1092 = vmatprep.mubr.bf16.mxu0 0
      %1093 = vmatmul.mubr.bf16.gmra.mxu0 %v1048
      %v1094 = vpop.f32.mrf.mxu0
      %v1095 = vadd.f32 0.0, %v1094
      %v1096 = vpop.f32.mrf.mxu0
      %v1097 = vadd.f32 0.0, %v1096
      %v1098 = vpop.f32.mrf.mxu0
      %v1099 = vpop.f32.mrf.mxu0
      %1100 = vdwg.mxu0
      %1101 = vmatprep.subr.bf16.mxu0 %v662
      %1102 = vmatpush1.bf16.msra.mxu0 %v661
      %1103 = vmatprep.subr.bf16.mxu0 %v658
      %1104 = vmatpush1.bf16.msra.mxu0 %v657
      %1105 = vmatprep.subr.bf16.mxu0 %v654
      %1106 = vmatpush1.bf16.msra.mxu0 %v653
      %1107 = vmatprep.subr.bf16.mxu0 %v650
      %1108 = vmatpush1.bf16.msra.mxu0 %v649
      %1109 = vmatprep.subr.bf16.mxu0 %v646
      %1110 = vmatpush1.bf16.msra.mxu0 %v645
      %1111 = vmatprep.subr.bf16.mxu0 %v642
      %1112 = vmatpush1.bf16.msra.mxu0 %v641
      %1113 = vmatprep.subr.bf16.mxu0 %v638
      %1114 = vmatpush1.bf16.msra.mxu0 %v637
      %1115 = vmatprep.subr.bf16.mxu0 %v634
      %1116 = vmatpush1.bf16.msra.mxu0 %v633
      %1117 = vmatprep.subr.bf16.mxu0 0
      %1118 = vmatpush2.bf16.msra.mxu0 0
      %1119 = vmatprep.subr.bf16.mxu0 0
      %1120 = vmatpush2.bf16.msra.mxu0 0
      %1121 = vmatprep.subr.bf16.mxu0 0
      %1122 = vmatpush2.bf16.msra.mxu0 0
      %1123 = vmatprep.subr.bf16.mxu0 0
      %1124 = vmatpush2.bf16.msra.mxu0 0
      %1125 = vmatprep.subr.bf16.mxu0 0
      %1126 = vmatpush2.bf16.msra.mxu0 0
      %1127 = vmatprep.subr.bf16.mxu0 0
      %1128 = vmatpush2.bf16.msra.mxu0 0
      %1129 = vmatprep.subr.bf16.mxu0 0
      %1130 = vmatpush2.bf16.msra.mxu0 0
      %1131 = vmatprep.subr.bf16.mxu0 0
      %1132 = vmatpush2.bf16.msra.mxu0 0
      %1133 = vmatprep.mubr.bf16.mxu0 0
      %1134 = vmatmul.mubr.bf16.gmra.mxu0 %v1048
      %v1135 = vpop.f32.mrf.mxu0
      %v1136 = vadd.f32 0.0, %v1135
      %v1137 = vpop.f32.mrf.mxu0
      %v1138 = vadd.f32 0.0, %v1137
      %v1139 = vpop.f32.mrf.mxu0
      %v1140 = vpop.f32.mrf.mxu0
      %1141 = vdwg.mxu0
      %v1142 = vadd.f32 %v1056, %v1095
      %v1143 = vadd.f32 %v1057, %v1097
      %v1144 = vadd.f32 %v1058, %v1136
      %v1145 = vadd.f32 %v1059, %v1138
      %v1146 = vxor.u32 %v1142, 2147483648
      %v1147 = vxor.u32 %v1143, 2147483648
      %v1148 = vxor.u32 %v1144, 2147483648
      %v1149 = vmul.f32 %v1146, 1.442695
      %v1150 = vpow.pop %v1149
      %v1151 = vmul.f32 %v1147, 1.442695
      %v1152 = vpow.pop %v1151
      %v1153 = vmul.f32 %v1148, 1.442695
      %v1154 = vpow.pop %v1153
      %v1155 = vadd.f32 %v1150, 1.0
      %v1156 = vadd.f32 %v1152, 1.0
      %v1157 = vadd.f32 %v1154, 1.0
      %v1158 = vrcp.pop %v1155
      %v1159 = vmul.f32 1.0, %v1158
      %v1160 = vrcp.pop %v1156
      %v1161 = vmul.f32 1.0, %v1160
      %v1162 = vrcp.pop %v1157
      %v1163 = vmul.f32 1.0, %v1162
      %v1164 = vtanh.pop %v1145
      %v1165 = vmul.f32 %v1161, %v1045
      %v1166 = vmul.f32 %v1159, %v1164
      %v1167 = vadd.f32 %v1165, %v1166
      %v1168 = vtanh.pop %v1167
      %v1169 = vmul.f32 %v1163, %v1168
      %v1170 = vpack.c.bf16 %v1169, %v1169
      %s1171 = scalar_lea.vmem [#allocation3], 12
      %1172 = vst [vmem:[%s1171] sm:$0xf] %v1170
      %1173 = vst [vmem:[#allocation4] sm:$0xff] %v1169
      %1174 = vst [vmem:[#allocation5] sm:$0xff] %v1167
      %v1175 = vld [vmem:[#allocation3] sm:$0xf]
      %v1176 = vld [vmem:[#allocation3 + $0x4] sm:$0xf]
      %v1177 = vld [vmem:[#allocation3 + $0x8] sm:$0xf]
      %v1178 = vld [vmem:[#allocation3 + $0xc] sm:$0xf]
      %v1179 = vld [vmem:[%s4] sm:$0xf]
      %v1180 = vld [vmem:[%s4 + $0x4] sm:$0xf]
      %v1181 = vld [vmem:[%s4 + $0x8] sm:$0xf]
      %v1182 = vld [vmem:[%s4 + $0xc] sm:$0xf]
      %v1183 = vld [vmem:[%s4 + $0x10] sm:$0xf]
      %v1184 = vld [vmem:[%s4 + $0x14] sm:$0xf]
      %v1185 = vld [vmem:[%s4 + $0x18] sm:$0xf]
      %v1186 = vld [vmem:[%s4 + $0x1c] sm:$0xf]
      %v1187 = vld [vmem:[%s4 + $0x20] sm:$0xf]
      %v1188 = vld [vmem:[%s4 + $0x24] sm:$0xf]
      %v1189 = vld [vmem:[%s4 + $0x28] sm:$0xf]
      %v1190 = vld [vmem:[%s4 + $0x2c] sm:$0xf]
      %v1191 = vld [vmem:[%s4 + $0x30] sm:$0xf]
      %v1192 = vld [vmem:[%s4 + $0x34] sm:$0xf]
      %v1193 = vld [vmem:[%s4 + $0x38] sm:$0xf]
      %v1194 = vld [vmem:[%s4 + $0x3c] sm:$0xf]
      %v1195 = vld [vmem:[%s5] sm:$0x1]
      %v1197 = vlaneseq
      %v1198 = vshrl.u32 %v1197, 7
      %v1199 = vsub.s32 0, %v1198
      %v1200 = vrot.slane %v1195, %v1199
      %v1206 = vunpack.c.l.b16 %v1175
      %v1207 = vunpack.c.l.b16 %v1176
      %v1208 = vunpack.c.l.b16 %v1177
      %v1209 = vunpack.c.l.b16 %v1178
      %v1210 = vpack.c.b16 %v1207, %v1206
      %v1211 = vpack.c.b16 %v1209, %v1208
      %v1230 = vunpack.c.l.b16 %v1179
      %v1231 = vunpack.c.l.b16 %v1180
      %v1232 = vunpack.c.l.b16 %v1181
      %v1233 = vunpack.c.l.b16 %v1182
      %v1234 = vunpack.c.l.b16 %v1183
      %v1235 = vunpack.c.l.b16 %v1184
      %v1236 = vunpack.c.l.b16 %v1185
      %v1237 = vunpack.c.l.b16 %v1186
      %v1238 = vunpack.c.l.b16 %v1187
      %v1239 = vunpack.c.l.b16 %v1188
      %v1240 = vunpack.c.l.b16 %v1189
      %v1241 = vunpack.c.l.b16 %v1190
      %v1242 = vunpack.c.l.b16 %v1191
      %v1243 = vunpack.c.l.b16 %v1192
      %v1244 = vunpack.c.l.b16 %v1193
      %v1245 = vunpack.c.l.b16 %v1194
      %v1246 = vpack.c.b16 %v1231, %v1230
      %v1247 = vpack.c.b16 %v1233, %v1232
      %v1248 = vpack.c.b16 %v1235, %v1234
      %v1249 = vpack.c.b16 %v1237, %v1236
      %v1250 = vpack.c.b16 %v1239, %v1238
      %v1251 = vpack.c.b16 %v1241, %v1240
      %v1252 = vpack.c.b16 %v1243, %v1242
      %v1253 = vpack.c.b16 %v1245, %v1244
      %1262 = vmatprep.subr.bf16.mxu0 0
      %1263 = vmatpush1.bf16.msra.mxu0 %v1253
      %1264 = vmatprep.subr.bf16.mxu0 0
      %1265 = vmatpush1.bf16.msra.mxu0 %v1252
      %1266 = vmatprep.subr.bf16.mxu0 0
      %1267 = vmatpush1.bf16.msra.mxu0 %v1251
      %1268 = vmatprep.subr.bf16.mxu0 0
      %1269 = vmatpush1.bf16.msra.mxu0 %v1250
      %1270 = vmatprep.subr.bf16.mxu0 0
      %1271 = vmatpush1.bf16.msra.mxu0 %v1249
      %1272 = vmatprep.subr.bf16.mxu0 0
      %1273 = vmatpush1.bf16.msra.mxu0 %v1248
      %1274 = vmatprep.subr.bf16.mxu0 0
      %1275 = vmatpush1.bf16.msra.mxu0 %v1247
      %1276 = vmatprep.subr.bf16.mxu0 0
      %1277 = vmatpush1.bf16.msra.mxu0 %v1246
      %1278 = vmatprep.subr.bf16.mxu0 0
      %1279 = vmatpush2.bf16.msra.mxu0 0
      %1280 = vmatprep.subr.bf16.mxu0 0
      %1281 = vmatpush2.bf16.msra.mxu0 0
      %1282 = vmatprep.subr.bf16.mxu0 0
      %1283 = vmatpush2.bf16.msra.mxu0 0
      %1284 = vmatprep.subr.bf16.mxu0 0
      %1285 = vmatpush2.bf16.msra.mxu0 0
      %1286 = vmatprep.subr.bf16.mxu0 0
      %1287 = vmatpush2.bf16.msra.mxu0 0
      %1288 = vmatprep.subr.bf16.mxu0 0
      %1289 = vmatpush2.bf16.msra.mxu0 0
      %1290 = vmatprep.subr.bf16.mxu0 0
      %1291 = vmatpush2.bf16.msra.mxu0 0
      %1292 = vmatprep.subr.bf16.mxu0 0
      %1293 = vmatpush2.bf16.msra.mxu0 0
      %1294 = vmatprep.mubr.bf16.mxu0 0
      %1295 = vmatmul.mubr.bf16.gmra.mxu0 %v1210
      %v1296 = vpop.f32.mrf.mxu0
      %v1297 = vadd.f32 %v1200, %v1296
      %v1298 = vpop.f32.mrf.mxu0
      %v1299 = vpop.f32.mrf.mxu0
      %v1300 = vadd.f32 %v1200, %v1299
      %v1301 = vpop.f32.mrf.mxu0
      %1302 = vmatprep.mubr.bf16.mxu0 0
      %1303 = vmatmul.mubr.bf16.gmra.mxu0 %v1211
      %v1304 = vpop.f32.mrf.mxu0
      %v1305 = vadd.f32 %v1200, %v1304
      %v1306 = vpop.f32.mrf.mxu0
      %v1307 = vpop.f32.mrf.mxu0
      %v1308 = vadd.f32 %v1200, %v1307
      %v1309 = vpop.f32.mrf.mxu0
      %1310 = vdwg.mxu0
      %1311 = vst [vmem:[%s253] sm:$0xff] %v1297
      %1312 = vst [vmem:[%s253 + $0x8] sm:$0xff] %v1300
      %1313 = vst [vmem:[%s253 + $0x10] sm:$0xff] %v1305
      %1314 = vst [vmem:[%s253 + $0x18] sm:$0xff] %v1308
      %s1315 = smul.u32 4, %s17
      %p1316 = scmp.lt.s32.totalorder %s1315, 7
      %s1317 = scalar_select %p1316, %s1315, 7
      %s1318 = smul.addr %s1317, 8
      %s1319 = scalar_lea.vmem %s6, %s1318
      // Predicated region
      $region49: #{simple_lstm_forward.1} parent=43 // pred_check
        %p1320 = pneg %p166
      $region50: #{simple_lstm_forward.1} parent=43 // pred_check_branch
        %1322 = sbr.rel (%p1320) target = $region52
      $region51: #{simple_lstm_forward.1} parent=43 // pred_region
        %s1323 = smul.u32 4, %s17
      $region52: #{simple_lstm_forward.1} parent=43 // pred_fallthru
        _
    $region44: #{simple_lstm_forward.1} parent=5 // pred_fallthru
      _
    %p1324 = scmp.le.s32.totalorder 2, %s12
    // Predicated region
    $region53: #{simple_lstm_forward.1} parent=5 // pred_check
      %p1325 = pneg %p1324
    $region54: #{simple_lstm_forward.1} parent=5 // pred_check_branch
      %1327 = sbr.rel (%p1325) target = $region56
    $region55: #{simple_lstm_forward.1} parent=5 // pred_region
      %s1328 = ssub.s32 %s12, 2
      // Predicated region
      $region57: #{simple_lstm_forward.1} parent=55 // pred_check
        %p1329 = pneg %p172
      $region58: #{simple_lstm_forward.1} parent=55 // pred_check_branch
        %1331 = sbr.rel (%p1329) target = $region60
      $region59: #{simple_lstm_forward.1} parent=55 // pred_region
        %s1332 = smul.u32 4, %s18
        %p1333 = scmp.lt.s32.totalorder %s1332, 7
        %s1334 = scalar_select %p1333, %s1332, 7
        %s1335 = smul.addr %s1334, 8
        %s1336 = scalar_lea.vmem %s6, %s1335
      $region60: #{simple_lstm_forward.1} parent=55 // pred_fallthru
        _
    $region56: #{simple_lstm_forward.1} parent=5 // pred_fallthru
      _
  $region6: #{simple_lstm_forward.1} parent=0 // loop_footer
    %s16 = sadd.s32 1, %s12
  $region7: #{simple_lstm_forward.1} parent=0 // loop_footer_branch
    %11 = sbr.rel target = $region3
  $region8: #{simple_lstm_forward.1} parent=0 // loop_exit
    _

</llo_original>
